<compile_context>
chip_gen: v7x
topology: tpu7x:2x2x1
jax: 0.10.0
libtpu: 0.0.40
codegen_flags: <defaults>
</compile_context>

<pallas_src>
import functools

import jax
import jax.numpy as jnp
from jax.experimental import pallas as pl
from jax.experimental.pallas import tpu as pltpu

LANE = 128
SUBLANE = 8


def _round_up(n, m):
    return ((n + m - 1) // m) * m


def _mlp_kernel(x_ref, w1_ref, b1_ref, w2_ref, b2_ref, w3_ref, b3_ref, o_ref):
    # x arrives as f32 (its HBM read is already paid); cast to bf16 for the MXU.
    x = x_ref[...].astype(jnp.bfloat16)
    # Layer 1: (TB, 1600) @ (1600, 512) -> f32 acc, +b1, ReLU
    h1 = jnp.dot(x, w1_ref[...], preferred_element_type=jnp.float32)
    h1 = jnp.maximum(h1 + b1_ref[...], 0.0)
    # Layer 2: (TB, 512) @ (512, 128) -> f32 acc, +b2, ReLU
    h2 = jnp.dot(h1.astype(jnp.bfloat16), w2_ref[...],
                 preferred_element_type=jnp.float32)
    h2 = jnp.maximum(h2 + b2_ref[...], 0.0)
    # Layer 3: (TB, 128) @ (128, 128 padded logits) -> f32 acc, +b3
    out = jnp.dot(h2.astype(jnp.bfloat16), w3_ref[...],
                  preferred_element_type=jnp.float32) + b3_ref[...]
    o_ref[...] = out.astype(o_ref.dtype)


def prepare_params(params):
    """One-time parameter prep: bf16 casts + pad logits dim to 128 lanes.

    Hoisted out of the per-call path so the forward does no weight pad/cast.
    Returns (padded_param_tuple, n_logits).
    """
    w1, b1, w2, b2, w3, b3 = params
    n_logits = w3.shape[1]
    o_pad = _round_up(n_logits, LANE)

    w1_p = jnp.asarray(w1, jnp.bfloat16)                      # (1600, 512)
    w2_p = jnp.asarray(w2, jnp.bfloat16)                      # (512, 128)
    w3_p = jnp.zeros((w3.shape[0], o_pad), jnp.bfloat16)
    w3_p = w3_p.at[:, :n_logits].set(jnp.asarray(w3, jnp.bfloat16))

    b1_p = jnp.asarray(b1, jnp.float32).reshape(1, -1)        # (1, 512)
    b2_p = jnp.asarray(b2, jnp.float32).reshape(1, -1)        # (1, 128)
    b3_p = jnp.zeros((1, o_pad), jnp.float32)
    b3_p = b3_p.at[:, :n_logits].set(jnp.asarray(b3, jnp.float32).reshape(1, -1))

    return (w1_p, b1_p, w2_p, b2_p, w3_p, b3_p), n_logits


def _choose_batch_tiling(batch, tb_max):
    """Balanced batch tiles (multiple of 8 rows, <=7 rows padding per tile).

    Forces >= 2 (and even) tiles whenever the batch allows, so the 'parallel'
    batch axis can shard across v7x's two TensorCores.
    """
    n_tiles = pl.cdiv(batch, tb_max)
    if batch >= 2 * SUBLANE:
        n_tiles = max(n_tiles, 2)
        n_tiles = 2 * pl.cdiv(n_tiles, 2)          # even tile count
    tb = _round_up(pl.cdiv(batch, n_tiles), SUBLANE)
    return tb, pl.cdiv(batch, tb)


@functools.partial(jax.jit, static_argnames=("n_logits", "tb_max"))
def _forward(x, w1_p, b1_p, w2_p, b2_p, w3_p, b3_p, *, n_logits, tb_max=1024):
    batch = x.shape[0]
    x_flat = x.reshape(batch, -1)                  # torch.flatten(x, 1): free
    in_features = x_flat.shape[1]                  # 1600
    assert in_features == w1_p.shape[0]
    h1_dim = w1_p.shape[1]                         # 512
    h2_dim = w2_p.shape[1]                         # 128
    o_pad = w3_p.shape[1]                          # 128

    tb, n_tiles = _choose_batch_tiling(batch, tb_max)
    const = lambda i: (0, 0)   # weights/biases resident across batch tiles

    out_padded = pl.pallas_call(
        _mlp_kernel,
        out_shape=jax.ShapeDtypeStruct((batch, o_pad), jnp.float32),
        grid_spec=pltpu.PrefetchScalarGridSpec(
            num_scalar_prefetch=0,
            grid=(n_tiles,),
            in_specs=[
                # x tile kept f32, full 1600-feature row (== full array dim)
                pl.BlockSpec((tb, in_features), lambda i: (i, 0)),
                pl.BlockSpec((in_features, h1_dim), const),   # w1
                pl.BlockSpec((1, h1_dim), const),             # b1
                pl.BlockSpec((h1_dim, h2_dim), const),        # w2
                pl.BlockSpec((1, h2_dim), const),             # b2
                pl.BlockSpec((h2_dim, o_pad), const),         # w3
                pl.BlockSpec((1, o_pad), const),              # b3
            ],
            out_specs=pl.BlockSpec((tb, o_pad), lambda i: (i, 0)),
        ),
        compiler_params=pltpu.CompilerParams(
            dimension_semantics=("parallel",),     # batch tiles over both TCs
            vmem_limit_bytes=32 * 1024 * 1024,     # TB=1024 fits on v5e too
        ),
    )(x_flat, w1_p, b1_p, w2_p, b2_p, w3_p, b3_p)

    return out_padded[:, :n_logits]


def two_layer_fc_forward(x, prepared, tb_max=1024):
    """x: (B, C, H, W) float32 with C*H*W == 1600. Returns (B, n_logits) f32."""
    padded_params, n_logits = prepared
    return _forward(x, *padded_params, n_logits=n_logits, tb_max=tb_max)


def init_params(key, n_logits):
    """Deterministic synthetic params with PyTorch Linear shapes
    (Linear(1600,512), Linear(512,128), Linear(128,n_logits)), stored (in, out)."""
    k1, k2, k3, k4, k5, k6 = jax.random.split(key, 6)

    def uni(k, shape, fan_in):
        bound = 1.0 / jnp.sqrt(fan_in)
        return jax.random.uniform(k, shape, jnp.float32, -bound, bound)

    w1 = uni(k1, (1600, 512), 1600)
    b1 = uni(k2, (1, 512), 1600)
    w2 = uni(k3, (512, 128), 512)
    b2 = uni(k4, (1, 128), 512)
    w3 = uni(k5, (128, n_logits), 128)
    b3 = uni(k6, (1, n_logits), 128)
    return (w1, b1, w2, b2, w3, b3)


def _reference(x, params):
    w1, b1, w2, b2, w3, b3 = params
    xf = x.reshape(x.shape[0], -1)
    h1 = jnp.maximum(xf @ w1 + b1, 0.0)
    h2 = jnp.maximum(h1 @ w2 + b2, 0.0)
    return h2 @ w3 + b3


if __name__ == "__main__":
    key = jax.random.PRNGKey(0)
    kx, kp = jax.random.split(key)
    n_logits = 10
    # 4 channels of 20x20 -> 4*400 = 1600 features after flatten (matches module)
    x = jax.random.normal(kx, (8, 4, 20, 20), jnp.float32)
    params = init_params(kp, n_logits)
    prepared = prepare_params(params)          # one-time weight pad/cast

    out = two_layer_fc_forward(x, prepared)
    out = jax.block_until_ready(out)

    ref = _reference(x, params)
    assert out.shape == (8, n_logits)
    # bf16 weights/activations => looser tolerance vs f32 reference
    assert jnp.allclose(out, ref, atol=3e-2, rtol=3e-2), (
        float(jnp.max(jnp.abs(out - ref))))
    print("KERNEL_OK")
</pallas_src>

<mosaic_0001>
module attributes {stable_mosaic.version = 11 : i64} {
  func.func @_mlp_kernel(%arg0: i32, %arg1: memref<8x1600xf32, #tpu.memory_space<vmem>>, %arg2: memref<1600x512xbf16, #tpu.memory_space<vmem>>, %arg3: memref<1x512xf32, #tpu.memory_space<vmem>>, %arg4: memref<512x128xbf16, #tpu.memory_space<vmem>>, %arg5: memref<1x128xf32, #tpu.memory_space<vmem>>, %arg6: memref<128x128xbf16, #tpu.memory_space<vmem>>, %arg7: memref<1x128xf32, #tpu.memory_space<vmem>>, %arg8: memref<8x128xf32, #tpu.memory_space<vmem>>) attributes {dimension_semantics = [#tpu.dimension_semantics<parallel>], iteration_bounds = array<i64: 1>, scalar_prefetch = 0 : i64, scratch_operands = 0 : i64, tpu.core_type = #tpu.core_type<tc>, window_params = [{transform_indices = @transform_0, window_bounds = array<i64: 8, 1600>}, {pipeline_mode = #tpu.pipeline_mode<synchronous>, transform_indices = @transform_1, window_bounds = array<i64: 1600, 512>}, {pipeline_mode = #tpu.pipeline_mode<synchronous>, transform_indices = @transform_2, window_bounds = array<i64: 1, 512>}, {pipeline_mode = #tpu.pipeline_mode<synchronous>, transform_indices = @transform_3, window_bounds = array<i64: 512, 128>}, {pipeline_mode = #tpu.pipeline_mode<synchronous>, transform_indices = @transform_4, window_bounds = array<i64: 1, 128>}, {pipeline_mode = #tpu.pipeline_mode<synchronous>, transform_indices = @transform_5, window_bounds = array<i64: 128, 128>}, {pipeline_mode = #tpu.pipeline_mode<synchronous>, transform_indices = @transform_6, window_bounds = array<i64: 1, 128>}, {transform_indices = @transform_7, window_bounds = array<i64: 8, 128>}]} {
    %c0 = arith.constant 0 : index
    %c0_0 = arith.constant 0 : index
    %0 = vector.load %arg1[%c0, %c0_0] : memref<8x1600xf32, #tpu.memory_space<vmem>>, vector<8x1600xf32>
    %1 = arith.truncf %0 : vector<8x1600xf32> to vector<8x1600xbf16>
    %c0_1 = arith.constant 0 : index
    %c0_2 = arith.constant 0 : index
    %2 = vector.load %arg2[%c0_1, %c0_2] : memref<1600x512xbf16, #tpu.memory_space<vmem>>, vector<1600x512xbf16>
    %cst = arith.constant dense<0.000000e+00> : vector<8x512xf32>
    %3 = tpu.matmul %1, %2, %cst {dimension_numbers = #tpu.dot_dimension_numbers<[1], [0], [0], [1], [0, 0, 1, 1], [], []>} : vector<8x1600xbf16>, vector<1600x512xbf16>, vector<8x512xf32> -> vector<8x512xf32>
    %c0_3 = arith.constant 0 : index
    %c0_4 = arith.constant 0 : index
    %4 = vector.load %arg3[%c0_3, %c0_4] : memref<1x512xf32, #tpu.memory_space<vmem>>, vector<1x512xf32>
    %5 = vector.broadcast %4 : vector<1x512xf32> to vector<8x512xf32>
    %6 = arith.addf %3, %5 : vector<8x512xf32>
    %cst_5 = arith.constant 0.000000e+00 : f32
    %7 = vector.broadcast %cst_5 : f32 to vector<8x512xf32>
    %8 = arith.maximumf %6, %7 : vector<8x512xf32>
    %9 = arith.truncf %8 : vector<8x512xf32> to vector<8x512xbf16>
    %c0_6 = arith.constant 0 : index
    %c0_7 = arith.constant 0 : index
    %10 = vector.load %arg4[%c0_6, %c0_7] : memref<512x128xbf16, #tpu.memory_space<vmem>>, vector<512x128xbf16>
    %cst_8 = arith.constant dense<0.000000e+00> : vector<8x128xf32>
    %11 = tpu.matmul %9, %10, %cst_8 {dimension_numbers = #tpu.dot_dimension_numbers<[1], [0], [0], [1], [0, 0, 1, 1], [], []>} : vector<8x512xbf16>, vector<512x128xbf16>, vector<8x128xf32> -> vector<8x128xf32>
    %c0_9 = arith.constant 0 : index
    %c0_10 = arith.constant 0 : index
    %12 = vector.load %arg5[%c0_9, %c0_10] : memref<1x128xf32, #tpu.memory_space<vmem>>, vector<1x128xf32>
    %13 = vector.broadcast %12 : vector<1x128xf32> to vector<8x128xf32>
    %14 = arith.addf %11, %13 : vector<8x128xf32>
    %cst_11 = arith.constant 0.000000e+00 : f32
    %15 = vector.broadcast %cst_11 : f32 to vector<8x128xf32>
    %16 = arith.maximumf %14, %15 : vector<8x128xf32>
    %17 = arith.truncf %16 : vector<8x128xf32> to vector<8x128xbf16>
    %c0_12 = arith.constant 0 : index
    %c0_13 = arith.constant 0 : index
    %18 = vector.load %arg6[%c0_12, %c0_13] : memref<128x128xbf16, #tpu.memory_space<vmem>>, vector<128x128xbf16>
    %cst_14 = arith.constant dense<0.000000e+00> : vector<8x128xf32>
    %19 = tpu.matmul %17, %18, %cst_14 {dimension_numbers = #tpu.dot_dimension_numbers<[1], [0], [0], [1], [0, 0, 1, 1], [], []>} : vector<8x128xbf16>, vector<128x128xbf16>, vector<8x128xf32> -> vector<8x128xf32>
    %c0_15 = arith.constant 0 : index
    %c0_16 = arith.constant 0 : index
    %20 = vector.load %arg7[%c0_15, %c0_16] : memref<1x128xf32, #tpu.memory_space<vmem>>, vector<1x128xf32>
    %21 = vector.broadcast %20 : vector<1x128xf32> to vector<8x128xf32>
    %22 = arith.addf %19, %21 : vector<8x128xf32>
    %c0_17 = arith.constant 0 : index
    %c0_18 = arith.constant 0 : index
    %23 = vector.load %arg8[%c0_17, %c0_18] : memref<8x128xf32, #tpu.memory_space<vmem>>, vector<8x128xf32>
    tpu.vector_store %arg8[%c0_17, %c0_18], %22 {strides = array<i32>} : memref<8x128xf32, #tpu.memory_space<vmem>>, vector<8x128xf32>,
    return
  }
  func.func @transform_0(%arg0: i32) -> (i32, i32) {
    %c0_i32 = arith.constant 0 : i32
    %c0_i32_0 = arith.constant 0 : i32
    return %arg0, %c0_i32 : i32, i32
  }
  func.func @transform_1(%arg0: i32) -> (i32, i32) {
    %c0_i32 = arith.constant 0 : i32
    %c0_i32_0 = arith.constant 0 : i32
    %c0_i32_1 = arith.constant 0 : i32
    return %c0_i32, %c0_i32_0 : i32, i32
  }
  func.func @transform_2(%arg0: i32) -> (i32, i32) {
    %c0_i32 = arith.constant 0 : i32
    %c0_i32_0 = arith.constant 0 : i32
    %c0_i32_1 = arith.constant 0 : i32
    return %c0_i32, %c0_i32_0 : i32, i32
  }
  func.func @transform_3(%arg0: i32) -> (i32, i32) {
    %c0_i32 = arith.constant 0 : i32
    %c0_i32_0 = arith.constant 0 : i32
    %c0_i32_1 = arith.constant 0 : i32
    return %c0_i32, %c0_i32_0 : i32, i32
  }
  func.func @transform_4(%arg0: i32) -> (i32, i32) {
    %c0_i32 = arith.constant 0 : i32
    %c0_i32_0 = arith.constant 0 : i32
    %c0_i32_1 = arith.constant 0 : i32
    return %c0_i32, %c0_i32_0 : i32, i32
  }
  func.func @transform_5(%arg0: i32) -> (i32, i32) {
    %c0_i32 = arith.constant 0 : i32
    %c0_i32_0 = arith.constant 0 : i32
    %c0_i32_1 = arith.constant 0 : i32
    return %c0_i32, %c0_i32_0 : i32, i32
  }
  func.func @transform_6(%arg0: i32) -> (i32, i32) {
    %c0_i32 = arith.constant 0 : i32
    %c0_i32_0 = arith.constant 0 : i32
    %c0_i32_1 = arith.constant 0 : i32
    return %c0_i32, %c0_i32_0 : i32, i32
  }
  func.func @transform_7(%arg0: i32) -> (i32, i32) {
    %c0_i32 = arith.constant 0 : i32
    %c0_i32_0 = arith.constant 0 : i32
    return %arg0, %c0_i32 : i32, i32
  }
}

</mosaic_0001>

<llo_original>
// kernel: _forward.1
$region0: #{_forward.1}
  #allocation0 [shape = 'u32[]', space=smem, size = 0x4, offset = 0x4, fixed_abs, tag = 'smem constant byte address 0x4 - core index']
  #allocation1 [shape = 'u32[144,128]{1,0:T(1,128)}', space=vmem, size = 0x12000, scoped, tag = 'internal scratch']
  %s0 = inlined_call_operand.vmem [shape: f32[8,1600], index: 0, kind: input, shape index: {}]
  %s1 = inlined_call_operand.hbm [shape: bf16[1600,512], index: 1, kind: input, shape index: {}]
  %s2 = inlined_call_operand.hbm [shape: f32[1,512], index: 2, kind: input, shape index: {}]
  %s3 = inlined_call_operand.hbm [shape: bf16[512,128], index: 3, kind: input, shape index: {}]
  %s4 = inlined_call_operand.hbm [shape: f32[1,128], index: 4, kind: input, shape index: {}]
  %s5 = inlined_call_operand.hbm [shape: bf16[128,128], index: 5, kind: input, shape index: {}]
  %s6 = inlined_call_operand.hbm [shape: f32[1,128], index: 6, kind: input, shape index: {}]
  %s7 = inlined_call_operand.hbm [shape: f32[8,128], index: 7, kind: output, shape index: {}]
  %s8 = sld [smem:[#allocation0]]
  $region62: #{_forward.1} parent=0
    _
  %s10 = ssub.s32 1, %s8
  %s11 = scalar_select 0, %s10, %s8
  $region1: #{_forward.1} parent=0
    #allocation2 [shape = 'u8[1638400]{0}', space=vmem, size = 0x190000, scoped, tag = 'input window, operand 1, single buffered']
    #allocation3 [shape = 's32[1]{0}', space=sflag, size = 0x4, scoped, tag = 'scoped memory for _forward.1']
    #allocation4 [shape = 's32[1]{0}', space=sflag, size = 0x4, scoped, tag = 'scoped memory for _forward.1']
    #allocation5 [shape = 'u8[2048]{0}', space=vmem, size = 0x800, scoped, tag = 'input window, operand 2, single buffered']
    #allocation6 [shape = 's32[1]{0}', space=sflag, size = 0x4, scoped, tag = 'scoped memory for _forward.1']
    #allocation7 [shape = 'u8[131072]{0}', space=vmem, size = 0x20000, scoped, tag = 'input window, operand 3, single buffered']
    #allocation8 [shape = 'u8[512]{0}', space=vmem, size = 0x400, scoped, tag = 'input window, operand 4, single buffered']
    #allocation9 [shape = 's32[1]{0}', space=sflag, size = 0x4, scoped, tag = 'scoped memory for _forward.1']
    #allocation10 [shape = 'u8[32768]{0}', space=vmem, size = 0x8000, scoped, tag = 'input window, operand 5, single buffered']
    #allocation11 [shape = 'u8[512]{0}', space=vmem, size = 0x400, scoped, tag = 'input window, operand 6, single buffered']
    #allocation12 [shape = 's32[1]{0}', space=sflag, size = 0x4, scoped, tag = 'scoped memory for _forward.1']
    #allocation13 [shape = 'u8[4096]{0}', space=vmem, size = 0x1000, scoped, tag = 'output window, operand 0, single buffered']
    %12 = vsyncpa [#allocation3], 0
    %13 = vsyncpa [#allocation6], 0
    %14 = vsyncpa [#allocation9], 0
    %15 = vsyncpa [#allocation12], 0
    %16 = vsyncpa [#allocation4], 0
    // Predicated region
    $region2: #{_forward.1} parent=1 // pred_check
      _
    $region3: #{_forward.1} parent=1 // pred_check_branch
      %18 = sbr.rel (0) target = $region5
    $region4: #{_forward.1} parent=1 // pred_region
      _
    $region5: #{_forward.1} parent=1 // pred_fallthru
      _
    // Predicated region
    $region6: #{_forward.1} parent=1 // pred_check
      _
    $region7: #{_forward.1} parent=1 // pred_check_branch
      %20 = sbr.rel (0) target = $region9
    $region8: #{_forward.1} parent=1 // pred_region
      %s22 = ssub.s32 51200, 51200
      %23 = vsyncadd [#allocation3], %s22
      %s24 = sshll.u32 [#allocation2], 4
      %s25 = int_to_ptr.vmem [resolvable:$true] %s24
      %30 = dma.hbm_to_vmem [thread:$0]  %s1, 51200, %s25, [#allocation3], 256, 256, 16
    $region9: #{_forward.1} parent=1 // pred_fallthru
      _
    // Predicated region
    $region10: #{_forward.1} parent=1 // pred_check
      _
    $region11: #{_forward.1} parent=1 // pred_check_branch
      %32 = sbr.rel (0) target = $region13
    $region12: #{_forward.1} parent=1 // pred_region
      %s34 = ssub.s32 64, 64
      %35 = vsyncadd [#allocation6], %s34
      %s37 = sshll.u32 [#allocation5], 4
      %s38 = int_to_ptr.vmem [resolvable:$true] %s37
      %40 = dma.hbm_to_vmem [thread:$0]  %s2, 64, %s38, [#allocation6]
    $region13: #{_forward.1} parent=1 // pred_fallthru
      _
    // Predicated region
    $region14: #{_forward.1} parent=1 // pred_check
      _
    $region15: #{_forward.1} parent=1 // pred_check_branch
      %42 = sbr.rel (0) target = $region17
    $region16: #{_forward.1} parent=1 // pred_region
      %s44 = ssub.s32 4096, 4096
      %45 = vsyncadd [#allocation6], %s44
      %s46 = sshll.u32 [#allocation7], 4
      %s47 = int_to_ptr.vmem [resolvable:$true] %s46
      %52 = dma.hbm_to_vmem [thread:$0]  %s3, 4096, %s47, [#allocation6], 64, 64, 4
    $region17: #{_forward.1} parent=1 // pred_fallthru
      _
    // Predicated region
    $region18: #{_forward.1} parent=1 // pred_check
      _
    $region19: #{_forward.1} parent=1 // pred_check_branch
      %54 = sbr.rel (0) target = $region21
    $region20: #{_forward.1} parent=1 // pred_region
      %s56 = ssub.s32 16, 16
      %57 = vsyncadd [#allocation9], %s56
      %s59 = sshll.u32 [#allocation8], 4
      %s60 = int_to_ptr.vmem [resolvable:$true] %s59
      %62 = dma.hbm_to_vmem [thread:$0]  %s4, 16, %s60, [#allocation9]
    $region21: #{_forward.1} parent=1 // pred_fallthru
      _
    // Predicated region
    $region22: #{_forward.1} parent=1 // pred_check
      _
    $region23: #{_forward.1} parent=1 // pred_check_branch
      %64 = sbr.rel (0) target = $region25
    $region24: #{_forward.1} parent=1 // pred_region
      %s66 = ssub.s32 1024, 1024
      %67 = vsyncadd [#allocation9], %s66
      %s68 = sshll.u32 [#allocation10], 4
      %s69 = int_to_ptr.vmem [resolvable:$true] %s68
      %74 = dma.hbm_to_vmem [thread:$0]  %s5, 1024, %s69, [#allocation9], 64, 64, 4
    $region25: #{_forward.1} parent=1 // pred_fallthru
      _
    // Predicated region
    $region26: #{_forward.1} parent=1 // pred_check
      _
    $region27: #{_forward.1} parent=1 // pred_check_branch
      %76 = sbr.rel (0) target = $region29
    $region28: #{_forward.1} parent=1 // pred_region
      %s78 = ssub.s32 16, 16
      %79 = vsyncadd [#allocation12], %s78
      %s81 = sshll.u32 [#allocation11], 4
      %s82 = int_to_ptr.vmem [resolvable:$true] %s81
      %84 = dma.hbm_to_vmem [thread:$0]  %s6, 16, %s82, [#allocation12]
    $region29: #{_forward.1} parent=1 // pred_fallthru
      _
    // Predicated region
    $region30: #{_forward.1} parent=1 // pred_check
      _
    $region31: #{_forward.1} parent=1 // pred_check_branch
      %86 = sbr.rel (0) target = $region33
    $region32: #{_forward.1} parent=1 // pred_region
      %87 = dma.done [#allocation3], 51200
    $region33: #{_forward.1} parent=1 // pred_fallthru
      _
    // Predicated region
    $region34: #{_forward.1} parent=1 // pred_check
      _
    $region35: #{_forward.1} parent=1 // pred_check_branch
      %89 = sbr.rel (0) target = $region37
    $region36: #{_forward.1} parent=1 // pred_region
      %90 = dma.done [#allocation6], 64
    $region37: #{_forward.1} parent=1 // pred_fallthru
      _
    // Predicated region
    $region38: #{_forward.1} parent=1 // pred_check
      _
    $region39: #{_forward.1} parent=1 // pred_check_branch
      %92 = sbr.rel (0) target = $region41
    $region40: #{_forward.1} parent=1 // pred_region
      %93 = dma.done [#allocation6], 4096
    $region41: #{_forward.1} parent=1 // pred_fallthru
      _
    // Predicated region
    $region42: #{_forward.1} parent=1 // pred_check
      _
    $region43: #{_forward.1} parent=1 // pred_check_branch
      %95 = sbr.rel (0) target = $region45
    $region44: #{_forward.1} parent=1 // pred_region
      %96 = dma.done [#allocation9], 16
    $region45: #{_forward.1} parent=1 // pred_fallthru
      _
    // Predicated region
    $region46: #{_forward.1} parent=1 // pred_check
      _
    $region47: #{_forward.1} parent=1 // pred_check_branch
      %98 = sbr.rel (0) target = $region49
    $region48: #{_forward.1} parent=1 // pred_region
      %99 = dma.done [#allocation9], 1024
    $region49: #{_forward.1} parent=1 // pred_fallthru
      _
    // Predicated region
    $region50: #{_forward.1} parent=1 // pred_check
      _
    $region51: #{_forward.1} parent=1 // pred_check_branch
      %101 = sbr.rel (0) target = $region53
    $region52: #{_forward.1} parent=1 // pred_region
      %102 = dma.done [#allocation12], 16
    $region53: #{_forward.1} parent=1 // pred_fallthru
      _
    %v104 = vld [vmem:[%s0] sm:$0xff]
    %v105 = vld [vmem:[%s0 + $0x8] sm:$0xff]
    %v106 = vld [vmem:[%s0 + $0x10] sm:$0xff]
    %v107 = vld [vmem:[%s0 + $0x18] sm:$0xff]
    %v108 = vld [vmem:[%s0 + $0x20] sm:$0xff]
    %v109 = vld [vmem:[%s0 + $0x28] sm:$0xff]
    %v110 = vld [vmem:[%s0 + $0x30] sm:$0xff]
    %v111 = vld [vmem:[%s0 + $0x38] sm:$0xff]
    %v112 = vld [vmem:[%s0 + $0x40] sm:$0xff]
    %v113 = vld [vmem:[%s0 + $0x48] sm:$0xff]
    %v114 = vld [vmem:[%s0 + $0x50] sm:$0xff]
    %v115 = vld [vmem:[%s0 + $0x58] sm:$0xff]
    %v116 = vld [vmem:[%s0 + $0x60] sm:$0xff]
    %v117 = vpack.c.bf16 %v104, %v104
    %v118 = vpack.c.bf16 %v105, %v105
    %v119 = vpack.c.bf16 %v106, %v106
    %v120 = vpack.c.bf16 %v107, %v107
    %v121 = vpack.c.bf16 %v108, %v108
    %v122 = vpack.c.bf16 %v109, %v109
    %v123 = vpack.c.bf16 %v110, %v110
    %v124 = vpack.c.bf16 %v111, %v111
    %v125 = vpack.c.bf16 %v112, %v112
    %v126 = vpack.c.bf16 %v113, %v113
    %v127 = vpack.c.bf16 %v114, %v114
    %v128 = vpack.c.bf16 %v115, %v115
    %v129 = vpack.c.bf16 %v116, %v116
    %v130 = vld [vmem:[#allocation2] sm:$0xff]
    %v131 = vld [vmem:[#allocation2 + $0x8] sm:$0xff]
    %v132 = vld [vmem:[#allocation2 + $0x10] sm:$0xff]
    %v133 = vld [vmem:[#allocation2 + $0x18] sm:$0xff]
    %v134 = vld [vmem:[#allocation2 + $0x20] sm:$0xff]
    %v135 = vld [vmem:[#allocation2 + $0x28] sm:$0xff]
    %v136 = vld [vmem:[#allocation2 + $0x30] sm:$0xff]
    %v137 = vld [vmem:[#allocation2 + $0x38] sm:$0xff]
    %v138 = vld [vmem:[#allocation2 + $0x40] sm:$0xff]
    %v139 = vld [vmem:[#allocation2 + $0x48] sm:$0xff]
    %v140 = vld [vmem:[#allocation2 + $0x50] sm:$0xff]
    %v141 = vld [vmem:[#allocation2 + $0x58] sm:$0xff]
    %v142 = vld [vmem:[#allocation2 + $0x60] sm:$0xff]
    %v143 = vld [vmem:[#allocation2 + $0x68] sm:$0xff]
    %v144 = vld [vmem:[#allocation2 + $0x70] sm:$0xff]
    %v145 = vld [vmem:[#allocation2 + $0x78] sm:$0xff]
    %v146 = vld [vmem:[#allocation2 + $0x80] sm:$0xff]
    %v147 = vld [vmem:[#allocation2 + $0x88] sm:$0xff]
    %v148 = vld [vmem:[#allocation2 + $0x90] sm:$0xff]
    %v149 = vld [vmem:[#allocation2 + $0x98] sm:$0xff]
    %v150 = vld [vmem:[#allocation2 + $0xa0] sm:$0xff]
    %v151 = vld [vmem:[#allocation2 + $0xa8] sm:$0xff]
    %v152 = vld [vmem:[#allocation2 + $0xb0] sm:$0xff]
    %v153 = vld [vmem:[#allocation2 + $0xb8] sm:$0xff]
    %v154 = vld [vmem:[#allocation2 + $0xc0] sm:$0xff]
    %v155 = vld [vmem:[#allocation2 + $0xc8] sm:$0xff]
    %v156 = vld [vmem:[#allocation2 + $0xd0] sm:$0xff]
    %v157 = vld [vmem:[#allocation2 + $0xd8] sm:$0xff]
    %v158 = vld [vmem:[#allocation2 + $0xe0] sm:$0xff]
    %v159 = vld [vmem:[#allocation2 + $0xe8] sm:$0xff]
    %v160 = vld [vmem:[#allocation2 + $0xf0] sm:$0xff]
    %v161 = vld [vmem:[#allocation2 + $0xf8] sm:$0xff]
    %v162 = vld [vmem:[#allocation2 + $0x100] sm:$0xff]
    %v163 = vld [vmem:[#allocation2 + $0x108] sm:$0xff]
    %v164 = vld [vmem:[#allocation2 + $0x110] sm:$0xff]
    %v165 = vld [vmem:[#allocation2 + $0x118] sm:$0xff]
    %v166 = vld [vmem:[#allocation2 + $0x120] sm:$0xff]
    %v167 = vld [vmem:[#allocation2 + $0x128] sm:$0xff]
    %v168 = vld [vmem:[#allocation2 + $0x130] sm:$0xff]
    %v169 = vld [vmem:[#allocation2 + $0x138] sm:$0xff]
    %v170 = vld [vmem:[#allocation2 + $0x140] sm:$0xff]
    %v171 = vld [vmem:[#allocation2 + $0x148] sm:$0xff]
    %v172 = vld [vmem:[#allocation2 + $0x150] sm:$0xff]
    %v173 = vld [vmem:[#allocation2 + $0x158] sm:$0xff]
    %v174 = vld [vmem:[#allocation2 + $0x160] sm:$0xff]
    %v175 = vld [vmem:[#allocation2 + $0x168] sm:$0xff]
    %v176 = vld [vmem:[#allocation2 + $0x170] sm:$0xff]
    %v177 = vld [vmem:[#allocation2 + $0x178] sm:$0xff]
    %v178 = vld [vmem:[#allocation2 + $0x180] sm:$0xff]
    %v179 = vld [vmem:[#allocation2 + $0x188] sm:$0xff]
    %v180 = vld [vmem:[#allocation2 + $0x190] sm:$0xff]
    %v181 = vld [vmem:[#allocation2 + $0x198] sm:$0xff]
    %v182 = vld [vmem:[#allocation2 + $0x1a0] sm:$0xff]
    %v183 = vld [vmem:[#allocation2 + $0x1a8] sm:$0xff]
    %v184 = vld [vmem:[#allocation2 + $0x1b0] sm:$0xff]
    %v185 = vld [vmem:[#allocation2 + $0x1b8] sm:$0xff]
    %v186 = vld [vmem:[#allocation2 + $0x1c0] sm:$0xff]
    %v187 = vld [vmem:[#allocation2 + $0x1c8] sm:$0xff]
    %v188 = vld [vmem:[#allocation2 + $0x1d0] sm:$0xff]
    %v189 = vld [vmem:[#allocation2 + $0x1d8] sm:$0xff]
    %v190 = vld [vmem:[#allocation2 + $0x1e0] sm:$0xff]
    %v191 = vld [vmem:[#allocation2 + $0x1e8] sm:$0xff]
    %v192 = vld [vmem:[#allocation2 + $0x1f0] sm:$0xff]
    %v193 = vld [vmem:[#allocation2 + $0x1f8] sm:$0xff]
    %v194 = vld [vmem:[#allocation2 + $0x200] sm:$0xff]
    %v195 = vld [vmem:[#allocation2 + $0x208] sm:$0xff]
    %v196 = vld [vmem:[#allocation2 + $0x210] sm:$0xff]
    %v197 = vld [vmem:[#allocation2 + $0x218] sm:$0xff]
    %v198 = vld [vmem:[#allocation2 + $0x220] sm:$0xff]
    %v199 = vld [vmem:[#allocation2 + $0x228] sm:$0xff]
    %v200 = vld [vmem:[#allocation2 + $0x230] sm:$0xff]
    %v201 = vld [vmem:[#allocation2 + $0x238] sm:$0xff]
    %v202 = vld [vmem:[#allocation2 + $0x240] sm:$0xff]
    %v203 = vld [vmem:[#allocation2 + $0x248] sm:$0xff]
    %v204 = vld [vmem:[#allocation2 + $0x250] sm:$0xff]
    %v205 = vld [vmem:[#allocation2 + $0x258] sm:$0xff]
    %v206 = vld [vmem:[#allocation2 + $0x260] sm:$0xff]
    %v207 = vld [vmem:[#allocation2 + $0x268] sm:$0xff]
    %v208 = vld [vmem:[#allocation2 + $0x270] sm:$0xff]
    %v209 = vld [vmem:[#allocation2 + $0x278] sm:$0xff]
    %v210 = vld [vmem:[#allocation2 + $0x280] sm:$0xff]
    %v211 = vld [vmem:[#allocation2 + $0x288] sm:$0xff]
    %v212 = vld [vmem:[#allocation2 + $0x290] sm:$0xff]
    %v213 = vld [vmem:[#allocation2 + $0x298] sm:$0xff]
    %v214 = vld [vmem:[#allocation2 + $0x2a0] sm:$0xff]
    %v215 = vld [vmem:[#allocation2 + $0x2a8] sm:$0xff]
    %v216 = vld [vmem:[#allocation2 + $0x2b0] sm:$0xff]
    %v217 = vld [vmem:[#allocation2 + $0x2b8] sm:$0xff]
    %v218 = vld [vmem:[#allocation2 + $0x2c0] sm:$0xff]
    %v219 = vld [vmem:[#allocation2 + $0x2c8] sm:$0xff]
    %v220 = vld [vmem:[#allocation2 + $0x2d0] sm:$0xff]
    %v221 = vld [vmem:[#allocation2 + $0x2d8] sm:$0xff]
    %v222 = vld [vmem:[#allocation2 + $0x2e0] sm:$0xff]
    %v223 = vld [vmem:[#allocation2 + $0x2e8] sm:$0xff]
    %v224 = vld [vmem:[#allocation2 + $0x2f0] sm:$0xff]
    %v225 = vld [vmem:[#allocation2 + $0x2f8] sm:$0xff]
    %v226 = vld [vmem:[#allocation2 + $0x300] sm:$0xff]
    %v227 = vld [vmem:[#allocation2 + $0x308] sm:$0xff]
    %v228 = vld [vmem:[#allocation2 + $0x310] sm:$0xff]
    %v229 = vld [vmem:[#allocation2 + $0x318] sm:$0xff]
    %v230 = vld [vmem:[#allocation2 + $0x320] sm:$0xff]
    %v231 = vld [vmem:[#allocation2 + $0x328] sm:$0xff]
    %v232 = vld [vmem:[#allocation2 + $0x330] sm:$0xff]
    %v233 = vld [vmem:[#allocation2 + $0x338] sm:$0xff]
    %v234 = vld [vmem:[#allocation2 + $0x340] sm:$0xff]
    %v235 = vld [vmem:[#allocation2 + $0x348] sm:$0xff]
    %v236 = vld [vmem:[#allocation2 + $0x350] sm:$0xff]
    %v237 = vld [vmem:[#allocation2 + $0x358] sm:$0xff]
    %v238 = vld [vmem:[#allocation2 + $0x360] sm:$0xff]
    %v239 = vld [vmem:[#allocation2 + $0x368] sm:$0xff]
    %v240 = vld [vmem:[#allocation2 + $0x370] sm:$0xff]
    %v241 = vld [vmem:[#allocation2 + $0x378] sm:$0xff]
    %v242 = vld [vmem:[#allocation2 + $0x380] sm:$0xff]
    %v243 = vld [vmem:[#allocation2 + $0x388] sm:$0xff]
    %v244 = vld [vmem:[#allocation2 + $0x390] sm:$0xff]
    %v245 = vld [vmem:[#allocation2 + $0x398] sm:$0xff]
    %v246 = vld [vmem:[#allocation2 + $0x3a0] sm:$0xff]
    %v247 = vld [vmem:[#allocation2 + $0x3a8] sm:$0xff]
    %v248 = vld [vmem:[#allocation2 + $0x3b0] sm:$0xff]
    %v249 = vld [vmem:[#allocation2 + $0x3b8] sm:$0xff]
    %v250 = vld [vmem:[#allocation2 + $0x3c0] sm:$0xff]
    %v251 = vld [vmem:[#allocation2 + $0x3c8] sm:$0xff]
    %v252 = vld [vmem:[#allocation2 + $0x3d0] sm:$0xff]
    %v253 = vld [vmem:[#allocation2 + $0x3d8] sm:$0xff]
    %v254 = vld [vmem:[#allocation2 + $0x3e0] sm:$0xff]
    %v255 = vld [vmem:[#allocation2 + $0x3e8] sm:$0xff]
    %v256 = vld [vmem:[#allocation2 + $0x3f0] sm:$0xff]
    %v257 = vld [vmem:[#allocation2 + $0x3f8] sm:$0xff]
    %v258 = vld [vmem:[#allocation2 + $0x400] sm:$0xff]
    %v259 = vld [vmem:[#allocation2 + $0x408] sm:$0xff]
    %v260 = vld [vmem:[#allocation2 + $0x410] sm:$0xff]
    %v261 = vld [vmem:[#allocation2 + $0x418] sm:$0xff]
    %v262 = vld [vmem:[#allocation2 + $0x420] sm:$0xff]
    %v263 = vld [vmem:[#allocation2 + $0x428] sm:$0xff]
    %v264 = vld [vmem:[#allocation2 + $0x430] sm:$0xff]
    %v265 = vld [vmem:[#allocation2 + $0x438] sm:$0xff]
    %v266 = vld [vmem:[#allocation2 + $0x440] sm:$0xff]
    %v267 = vld [vmem:[#allocation2 + $0x448] sm:$0xff]
    %v268 = vld [vmem:[#allocation2 + $0x450] sm:$0xff]
    %v269 = vld [vmem:[#allocation2 + $0x458] sm:$0xff]
    %v270 = vld [vmem:[#allocation2 + $0x460] sm:$0xff]
    %v271 = vld [vmem:[#allocation2 + $0x468] sm:$0xff]
    %v272 = vld [vmem:[#allocation2 + $0x470] sm:$0xff]
    %v273 = vld [vmem:[#allocation2 + $0x478] sm:$0xff]
    %v274 = vld [vmem:[#allocation2 + $0x480] sm:$0xff]
    %v275 = vld [vmem:[#allocation2 + $0x488] sm:$0xff]
    %v276 = vld [vmem:[#allocation2 + $0x490] sm:$0xff]
    %v277 = vld [vmem:[#allocation2 + $0x498] sm:$0xff]
    %v278 = vld [vmem:[#allocation2 + $0x4a0] sm:$0xff]
    %v279 = vld [vmem:[#allocation2 + $0x4a8] sm:$0xff]
    %v280 = vld [vmem:[#allocation2 + $0x4b0] sm:$0xff]
    %v281 = vld [vmem:[#allocation2 + $0x4b8] sm:$0xff]
    %v282 = vld [vmem:[#allocation2 + $0x4c0] sm:$0xff]
    %v283 = vld [vmem:[#allocation2 + $0x4c8] sm:$0xff]
    %v284 = vld [vmem:[#allocation2 + $0x4d0] sm:$0xff]
    %v285 = vld [vmem:[#allocation2 + $0x4d8] sm:$0xff]
    %v286 = vld [vmem:[#allocation2 + $0x4e0] sm:$0xff]
    %v287 = vld [vmem:[#allocation2 + $0x4e8] sm:$0xff]
    %v288 = vld [vmem:[#allocation2 + $0x4f0] sm:$0xff]
    %v289 = vld [vmem:[#allocation2 + $0x4f8] sm:$0xff]
    %v290 = vld [vmem:[#allocation2 + $0x500] sm:$0xff]
    %v291 = vld [vmem:[#allocation2 + $0x508] sm:$0xff]
    %v292 = vld [vmem:[#allocation2 + $0x510] sm:$0xff]
    %v293 = vld [vmem:[#allocation2 + $0x518] sm:$0xff]
    %v294 = vld [vmem:[#allocation2 + $0x520] sm:$0xff]
    %v295 = vld [vmem:[#allocation2 + $0x528] sm:$0xff]
    %v296 = vld [vmem:[#allocation2 + $0x530] sm:$0xff]
    %v297 = vld [vmem:[#allocation2 + $0x538] sm:$0xff]
    %v298 = vld [vmem:[#allocation2 + $0x540] sm:$0xff]
    %v299 = vld [vmem:[#allocation2 + $0x548] sm:$0xff]
    %v300 = vld [vmem:[#allocation2 + $0x550] sm:$0xff]
    %v301 = vld [vmem:[#allocation2 + $0x558] sm:$0xff]
    %v302 = vld [vmem:[#allocation2 + $0x560] sm:$0xff]
    %v303 = vld [vmem:[#allocation2 + $0x568] sm:$0xff]
    %v304 = vld [vmem:[#allocation2 + $0x570] sm:$0xff]
    %v305 = vld [vmem:[#allocation2 + $0x578] sm:$0xff]
    %v306 = vld [vmem:[#allocation2 + $0x580] sm:$0xff]
    %v307 = vld [vmem:[#allocation2 + $0x588] sm:$0xff]
    %v308 = vld [vmem:[#allocation2 + $0x590] sm:$0xff]
    %v309 = vld [vmem:[#allocation2 + $0x598] sm:$0xff]
    %v310 = vld [vmem:[#allocation2 + $0x5a0] sm:$0xff]
    %v311 = vld [vmem:[#allocation2 + $0x5a8] sm:$0xff]
    %v312 = vld [vmem:[#allocation2 + $0x5b0] sm:$0xff]
    %v313 = vld [vmem:[#allocation2 + $0x5b8] sm:$0xff]
    %v314 = vld [vmem:[#allocation2 + $0x5c0] sm:$0xff]
    %v315 = vld [vmem:[#allocation2 + $0x5c8] sm:$0xff]
    %v316 = vld [vmem:[#allocation2 + $0x5d0] sm:$0xff]
    %v317 = vld [vmem:[#allocation2 + $0x5d8] sm:$0xff]
    %v318 = vld [vmem:[#allocation2 + $0x5e0] sm:$0xff]
    %v319 = vld [vmem:[#allocation2 + $0x5e8] sm:$0xff]
    %v320 = vld [vmem:[#allocation2 + $0x5f0] sm:$0xff]
    %v321 = vld [vmem:[#allocation2 + $0x5f8] sm:$0xff]
    %v322 = vld [vmem:[#allocation2 + $0x600] sm:$0xff]
    %v323 = vld [vmem:[#allocation2 + $0x608] sm:$0xff]
    %v324 = vld [vmem:[#allocation2 + $0x610] sm:$0xff]
    %v325 = vld [vmem:[#allocation2 + $0x618] sm:$0xff]
    %v326 = vld [vmem:[#allocation2 + $0x620] sm:$0xff]
    %v327 = vld [vmem:[#allocation2 + $0x628] sm:$0xff]
    %v328 = vld [vmem:[#allocation2 + $0x630] sm:$0xff]
    %v329 = vld [vmem:[#allocation2 + $0x638] sm:$0xff]
    %v330 = vld [vmem:[#allocation2 + $0x640] sm:$0xff]
    %v331 = vld [vmem:[#allocation2 + $0x648] sm:$0xff]
    %v332 = vld [vmem:[#allocation2 + $0x650] sm:$0xff]
    %v333 = vld [vmem:[#allocation2 + $0x658] sm:$0xff]
    %v334 = vld [vmem:[#allocation2 + $0x660] sm:$0xff]
    %v335 = vld [vmem:[#allocation2 + $0x668] sm:$0xff]
    %v336 = vld [vmem:[#allocation2 + $0x670] sm:$0xff]
    %v337 = vld [vmem:[#allocation2 + $0x678] sm:$0xff]
    %v338 = vld [vmem:[#allocation2 + $0x680] sm:$0xff]
    %v339 = vld [vmem:[#allocation2 + $0x688] sm:$0xff]
    %v340 = vld [vmem:[#allocation2 + $0x690] sm:$0xff]
    %v341 = vld [vmem:[#allocation2 + $0x698] sm:$0xff]
    %v342 = vld [vmem:[#allocation2 + $0x6a0] sm:$0xff]
    %v343 = vld [vmem:[#allocation2 + $0x6a8] sm:$0xff]
    %v344 = vld [vmem:[#allocation2 + $0x6b0] sm:$0xff]
    %v345 = vld [vmem:[#allocation2 + $0x6b8] sm:$0xff]
    %v346 = vld [vmem:[#allocation2 + $0x6c0] sm:$0xff]
    %v347 = vld [vmem:[#allocation2 + $0x6c8] sm:$0xff]
    %v348 = vld [vmem:[#allocation2 + $0x6d0] sm:$0xff]
    %v349 = vld [vmem:[#allocation2 + $0x6d8] sm:$0xff]
    %v350 = vld [vmem:[#allocation2 + $0x6e0] sm:$0xff]
    %v351 = vld [vmem:[#allocation2 + $0x6e8] sm:$0xff]
    %v352 = vld [vmem:[#allocation2 + $0x6f0] sm:$0xff]
    %v353 = vld [vmem:[#allocation2 + $0x6f8] sm:$0xff]
    %v354 = vld [vmem:[#allocation2 + $0x700] sm:$0xff]
    %v355 = vld [vmem:[#allocation2 + $0x708] sm:$0xff]
    %v356 = vld [vmem:[#allocation2 + $0x710] sm:$0xff]
    %v357 = vld [vmem:[#allocation2 + $0x718] sm:$0xff]
    %v358 = vld [vmem:[#allocation2 + $0x720] sm:$0xff]
    %v359 = vld [vmem:[#allocation2 + $0x728] sm:$0xff]
    %v360 = vld [vmem:[#allocation2 + $0x730] sm:$0xff]
    %v361 = vld [vmem:[#allocation2 + $0x738] sm:$0xff]
    %v362 = vld [vmem:[#allocation2 + $0x740] sm:$0xff]
    %v363 = vld [vmem:[#allocation2 + $0x748] sm:$0xff]
    %v364 = vld [vmem:[#allocation2 + $0x750] sm:$0xff]
    %v365 = vld [vmem:[#allocation2 + $0x758] sm:$0xff]
    %v366 = vld [vmem:[#allocation2 + $0x760] sm:$0xff]
    %v367 = vld [vmem:[#allocation2 + $0x768] sm:$0xff]
    %v368 = vld [vmem:[#allocation2 + $0x770] sm:$0xff]
    %v369 = vld [vmem:[#allocation2 + $0x778] sm:$0xff]
    %v370 = vld [vmem:[#allocation2 + $0x780] sm:$0xff]
    %v371 = vld [vmem:[#allocation2 + $0x788] sm:$0xff]
    %v372 = vld [vmem:[#allocation2 + $0x790] sm:$0xff]
    %v373 = vld [vmem:[#allocation2 + $0x798] sm:$0xff]
    %v374 = vld [vmem:[#allocation2 + $0x7a0] sm:$0xff]
    %v375 = vld [vmem:[#allocation2 + $0x7a8] sm:$0xff]
    %v376 = vld [vmem:[#allocation2 + $0x7b0] sm:$0xff]
    %v377 = vld [vmem:[#allocation2 + $0x7b8] sm:$0xff]
    %v378 = vld [vmem:[#allocation2 + $0x7c0] sm:$0xff]
    %v379 = vld [vmem:[#allocation2 + $0x7c8] sm:$0xff]
    %v380 = vld [vmem:[#allocation2 + $0x7d0] sm:$0xff]
    %v381 = vld [vmem:[#allocation2 + $0x7d8] sm:$0xff]
    %v382 = vld [vmem:[#allocation2 + $0x7e0] sm:$0xff]
    %v383 = vld [vmem:[#allocation2 + $0x7e8] sm:$0xff]
    %v384 = vld [vmem:[#allocation2 + $0x7f0] sm:$0xff]
    %v385 = vld [vmem:[#allocation2 + $0x7f8] sm:$0xff]
    %v386 = vld [vmem:[#allocation2 + $0x800] sm:$0xff]
    %v387 = vld [vmem:[#allocation2 + $0x808] sm:$0xff]
    %v388 = vld [vmem:[#allocation2 + $0x810] sm:$0xff]
    %v389 = vld [vmem:[#allocation2 + $0x818] sm:$0xff]
    %v390 = vld [vmem:[#allocation2 + $0x820] sm:$0xff]
    %v391 = vld [vmem:[#allocation2 + $0x828] sm:$0xff]
    %v392 = vld [vmem:[#allocation2 + $0x830] sm:$0xff]
    %v393 = vld [vmem:[#allocation2 + $0x838] sm:$0xff]
    %v394 = vld [vmem:[#allocation2 + $0x840] sm:$0xff]
    %v395 = vld [vmem:[#allocation2 + $0x848] sm:$0xff]
    %v396 = vld [vmem:[#allocation2 + $0x850] sm:$0xff]
    %v397 = vld [vmem:[#allocation2 + $0x858] sm:$0xff]
    %v398 = vld [vmem:[#allocation2 + $0x860] sm:$0xff]
    %v399 = vld [vmem:[#allocation2 + $0x868] sm:$0xff]
    %v400 = vld [vmem:[#allocation2 + $0x870] sm:$0xff]
    %v401 = vld [vmem:[#allocation2 + $0x878] sm:$0xff]
    %v402 = vld [vmem:[#allocation2 + $0x880] sm:$0xff]
    %v403 = vld [vmem:[#allocation2 + $0x888] sm:$0xff]
    %v404 = vld [vmem:[#allocation2 + $0x890] sm:$0xff]
    %v405 = vld [vmem:[#allocation2 + $0x898] sm:$0xff]
    %v406 = vld [vmem:[#allocation2 + $0x8a0] sm:$0xff]
    %v407 = vld [vmem:[#allocation2 + $0x8a8] sm:$0xff]
    %v408 = vld [vmem:[#allocation2 + $0x8b0] sm:$0xff]
    %v409 = vld [vmem:[#allocation2 + $0x8b8] sm:$0xff]
    %v410 = vld [vmem:[#allocation2 + $0x8c0] sm:$0xff]
    %v411 = vld [vmem:[#allocation2 + $0x8c8] sm:$0xff]
    %v412 = vld [vmem:[#allocation2 + $0x8d0] sm:$0xff]
    %v413 = vld [vmem:[#allocation2 + $0x8d8] sm:$0xff]
    %v414 = vld [vmem:[#allocation2 + $0x8e0] sm:$0xff]
    %v415 = vld [vmem:[#allocation2 + $0x8e8] sm:$0xff]
    %v416 = vld [vmem:[#allocation2 + $0x8f0] sm:$0xff]
    %v417 = vld [vmem:[#allocation2 + $0x8f8] sm:$0xff]
    %v418 = vld [vmem:[#allocation2 + $0x900] sm:$0xff]
    %v419 = vld [vmem:[#allocation2 + $0x908] sm:$0xff]
    %v420 = vld [vmem:[#allocation2 + $0x910] sm:$0xff]
    %v421 = vld [vmem:[#allocation2 + $0x918] sm:$0xff]
    %v422 = vld [vmem:[#allocation2 + $0x920] sm:$0xff]
    %v423 = vld [vmem:[#allocation2 + $0x928] sm:$0xff]
    %v424 = vld [vmem:[#allocation2 + $0x930] sm:$0xff]
    %v425 = vld [vmem:[#allocation2 + $0x938] sm:$0xff]
    %v426 = vld [vmem:[#allocation2 + $0x940] sm:$0xff]
    %v427 = vld [vmem:[#allocation2 + $0x948] sm:$0xff]
    %v428 = vld [vmem:[#allocation2 + $0x950] sm:$0xff]
    %v429 = vld [vmem:[#allocation2 + $0x958] sm:$0xff]
    %v430 = vld [vmem:[#allocation2 + $0x960] sm:$0xff]
    %v431 = vld [vmem:[#allocation2 + $0x968] sm:$0xff]
    %v432 = vld [vmem:[#allocation2 + $0x970] sm:$0xff]
    %v433 = vld [vmem:[#allocation2 + $0x978] sm:$0xff]
    %v434 = vld [vmem:[#allocation2 + $0x980] sm:$0xff]
    %v435 = vld [vmem:[#allocation2 + $0x988] sm:$0xff]
    %v436 = vld [vmem:[#allocation2 + $0x990] sm:$0xff]
    %v437 = vld [vmem:[#allocation2 + $0x998] sm:$0xff]
    %v438 = vld [vmem:[#allocation2 + $0x9a0] sm:$0xff]
    %v439 = vld [vmem:[#allocation2 + $0x9a8] sm:$0xff]
    %v440 = vld [vmem:[#allocation2 + $0x9b0] sm:$0xff]
    %v441 = vld [vmem:[#allocation2 + $0x9b8] sm:$0xff]
    %v442 = vld [vmem:[#allocation2 + $0x9c0] sm:$0xff]
    %v443 = vld [vmem:[#allocation2 + $0x9c8] sm:$0xff]
    %v444 = vld [vmem:[#allocation2 + $0x9d0] sm:$0xff]
    %v445 = vld [vmem:[#allocation2 + $0x9d8] sm:$0xff]
    %v446 = vld [vmem:[#allocation2 + $0x9e0] sm:$0xff]
    %v447 = vld [vmem:[#allocation2 + $0x9e8] sm:$0xff]
    %v448 = vld [vmem:[#allocation2 + $0x9f0] sm:$0xff]
    %v449 = vld [vmem:[#allocation2 + $0x9f8] sm:$0xff]
    %v450 = vld [vmem:[#allocation2 + $0xa00] sm:$0xff]
    %v451 = vld [vmem:[#allocation2 + $0xa08] sm:$0xff]
    %v452 = vld [vmem:[#allocation2 + $0xa10] sm:$0xff]
    %v453 = vld [vmem:[#allocation2 + $0xa18] sm:$0xff]
    %v454 = vld [vmem:[#allocation2 + $0xa20] sm:$0xff]
    %v455 = vld [vmem:[#allocation2 + $0xa28] sm:$0xff]
    %v456 = vld [vmem:[#allocation2 + $0xa30] sm:$0xff]
    %v457 = vld [vmem:[#allocation2 + $0xa38] sm:$0xff]
    %v458 = vld [vmem:[#allocation2 + $0xa40] sm:$0xff]
    %v459 = vld [vmem:[#allocation2 + $0xa48] sm:$0xff]
    %v460 = vld [vmem:[#allocation2 + $0xa50] sm:$0xff]
    %v461 = vld [vmem:[#allocation2 + $0xa58] sm:$0xff]
    %v462 = vld [vmem:[#allocation2 + $0xa60] sm:$0xff]
    %v463 = vld [vmem:[#allocation2 + $0xa68] sm:$0xff]
    %v464 = vld [vmem:[#allocation2 + $0xa70] sm:$0xff]
    %v465 = vld [vmem:[#allocation2 + $0xa78] sm:$0xff]
    %v466 = vld [vmem:[#allocation2 + $0xa80] sm:$0xff]
    %v467 = vld [vmem:[#allocation2 + $0xa88] sm:$0xff]
    %v468 = vld [vmem:[#allocation2 + $0xa90] sm:$0xff]
    %v469 = vld [vmem:[#allocation2 + $0xa98] sm:$0xff]
    %v470 = vld [vmem:[#allocation2 + $0xaa0] sm:$0xff]
    %v471 = vld [vmem:[#allocation2 + $0xaa8] sm:$0xff]
    %v472 = vld [vmem:[#allocation2 + $0xab0] sm:$0xff]
    %v473 = vld [vmem:[#allocation2 + $0xab8] sm:$0xff]
    %v474 = vld [vmem:[#allocation2 + $0xac0] sm:$0xff]
    %v475 = vld [vmem:[#allocation2 + $0xac8] sm:$0xff]
    %v476 = vld [vmem:[#allocation2 + $0xad0] sm:$0xff]
    %v477 = vld [vmem:[#allocation2 + $0xad8] sm:$0xff]
    %v478 = vld [vmem:[#allocation2 + $0xae0] sm:$0xff]
    %v479 = vld [vmem:[#allocation2 + $0xae8] sm:$0xff]
    %v480 = vld [vmem:[#allocation2 + $0xaf0] sm:$0xff]
    %v481 = vld [vmem:[#allocation2 + $0xaf8] sm:$0xff]
    %v482 = vld [vmem:[#allocation2 + $0xb00] sm:$0xff]
    %v483 = vld [vmem:[#allocation2 + $0xb08] sm:$0xff]
    %v484 = vld [vmem:[#allocation2 + $0xb10] sm:$0xff]
    %v485 = vld [vmem:[#allocation2 + $0xb18] sm:$0xff]
    %v486 = vld [vmem:[#allocation2 + $0xb20] sm:$0xff]
    %v487 = vld [vmem:[#allocation2 + $0xb28] sm:$0xff]
    %v488 = vld [vmem:[#allocation2 + $0xb30] sm:$0xff]
    %v489 = vld [vmem:[#allocation2 + $0xb38] sm:$0xff]
    %v490 = vld [vmem:[#allocation2 + $0xb40] sm:$0xff]
    %v491 = vld [vmem:[#allocation2 + $0xb48] sm:$0xff]
    %v492 = vld [vmem:[#allocation2 + $0xb50] sm:$0xff]
    %v493 = vld [vmem:[#allocation2 + $0xb58] sm:$0xff]
    %v494 = vld [vmem:[#allocation2 + $0xb60] sm:$0xff]
    %v495 = vld [vmem:[#allocation2 + $0xb68] sm:$0xff]
    %v496 = vld [vmem:[#allocation2 + $0xb70] sm:$0xff]
    %v497 = vld [vmem:[#allocation2 + $0xb78] sm:$0xff]
    %v498 = vld [vmem:[#allocation2 + $0xb80] sm:$0xff]
    %v499 = vld [vmem:[#allocation2 + $0xb88] sm:$0xff]
    %v500 = vld [vmem:[#allocation2 + $0xb90] sm:$0xff]
    %v501 = vld [vmem:[#allocation2 + $0xb98] sm:$0xff]
    %v502 = vld [vmem:[#allocation2 + $0xba0] sm:$0xff]
    %v503 = vld [vmem:[#allocation2 + $0xba8] sm:$0xff]
    %v504 = vld [vmem:[#allocation2 + $0xbb0] sm:$0xff]
    %v505 = vld [vmem:[#allocation2 + $0xbb8] sm:$0xff]
    %v506 = vld [vmem:[#allocation2 + $0xbc0] sm:$0xff]
    %v507 = vld [vmem:[#allocation2 + $0xbc8] sm:$0xff]
    %v508 = vld [vmem:[#allocation2 + $0xbd0] sm:$0xff]
    %v509 = vld [vmem:[#allocation2 + $0xbd8] sm:$0xff]
    %v510 = vld [vmem:[#allocation2 + $0xbe0] sm:$0xff]
    %v511 = vld [vmem:[#allocation2 + $0xbe8] sm:$0xff]
    %v512 = vld [vmem:[#allocation2 + $0xbf0] sm:$0xff]
    %v513 = vld [vmem:[#allocation2 + $0xbf8] sm:$0xff]
    %v514 = vld [vmem:[#allocation2 + $0xc00] sm:$0xff]
    %v515 = vld [vmem:[#allocation2 + $0xc08] sm:$0xff]
    %v516 = vld [vmem:[#allocation2 + $0xc10] sm:$0xff]
    %v517 = vld [vmem:[#allocation2 + $0xc18] sm:$0xff]
    %v518 = vld [vmem:[#allocation2 + $0xc20] sm:$0xff]
    %v519 = vld [vmem:[#allocation2 + $0xc28] sm:$0xff]
    %v520 = vld [vmem:[#allocation2 + $0xc30] sm:$0xff]
    %v521 = vld [vmem:[#allocation2 + $0xc38] sm:$0xff]
    %v522 = vld [vmem:[#allocation2 + $0xc40] sm:$0xff]
    %v523 = vld [vmem:[#allocation2 + $0xc48] sm:$0xff]
    %v524 = vld [vmem:[#allocation2 + $0xc50] sm:$0xff]
    %v525 = vld [vmem:[#allocation2 + $0xc58] sm:$0xff]
    %v526 = vld [vmem:[#allocation2 + $0xc60] sm:$0xff]
    %v527 = vld [vmem:[#allocation2 + $0xc68] sm:$0xff]
    %v528 = vld [vmem:[#allocation2 + $0xc70] sm:$0xff]
    %v529 = vld [vmem:[#allocation2 + $0xc78] sm:$0xff]
    %v530 = vld [vmem:[#allocation5] sm:$0xf]
    %v532 = vlaneseq
    %v533 = vshrl.u32 %v532, 7
    %v534 = vsub.s32 0, %v533
    %v535 = vrot.slane %v530, %v534
    %v536 = vlaneseq
    %v537 = vshrl.u32 %v536, 7
    %v538 = vsub.s32 1, %v537
    %v539 = vrot.slane %v530, %v538
    %v540 = vlaneseq
    %v541 = vshrl.u32 %v540, 7
    %v542 = vsub.s32 2, %v541
    %v543 = vrot.slane %v530, %v542
    %v544 = vlaneseq
    %v545 = vshrl.u32 %v544, 7
    %v546 = vsub.s32 3, %v545
    %v547 = vrot.slane %v530, %v546
    %v952 = vunpack.c.l.b16 %v130
    %v953 = vunpack.c.h.b16 %v130
    %v954 = vunpack.c.l.b16 %v131
    %v955 = vunpack.c.h.b16 %v131
    %v956 = vunpack.c.l.b16 %v132
    %v957 = vunpack.c.h.b16 %v132
    %v958 = vunpack.c.l.b16 %v133
    %v959 = vunpack.c.h.b16 %v133
    %v960 = vunpack.c.l.b16 %v134
    %v961 = vunpack.c.h.b16 %v134
    %v962 = vunpack.c.l.b16 %v135
    %v963 = vunpack.c.h.b16 %v135
    %v964 = vunpack.c.l.b16 %v136
    %v965 = vunpack.c.h.b16 %v136
    %v966 = vunpack.c.l.b16 %v137
    %v967 = vunpack.c.h.b16 %v137
    %v968 = vunpack.c.l.b16 %v138
    %v969 = vunpack.c.h.b16 %v138
    %v970 = vunpack.c.l.b16 %v139
    %v971 = vunpack.c.h.b16 %v139
    %v972 = vunpack.c.l.b16 %v140
    %v973 = vunpack.c.h.b16 %v140
    %v974 = vunpack.c.l.b16 %v141
    %v975 = vunpack.c.h.b16 %v141
    %v976 = vunpack.c.l.b16 %v142
    %v977 = vunpack.c.h.b16 %v142
    %v978 = vunpack.c.l.b16 %v143
    %v979 = vunpack.c.h.b16 %v143
    %v980 = vunpack.c.l.b16 %v144
    %v981 = vunpack.c.h.b16 %v144
    %v982 = vunpack.c.l.b16 %v145
    %v983 = vunpack.c.h.b16 %v145
    %v984 = vunpack.c.l.b16 %v146
    %v985 = vunpack.c.h.b16 %v146
    %v986 = vunpack.c.l.b16 %v147
    %v987 = vunpack.c.h.b16 %v147
    %v988 = vunpack.c.l.b16 %v148
    %v989 = vunpack.c.h.b16 %v148
    %v990 = vunpack.c.l.b16 %v149
    %v991 = vunpack.c.h.b16 %v149
    %v992 = vunpack.c.l.b16 %v150
    %v993 = vunpack.c.h.b16 %v150
    %v994 = vunpack.c.l.b16 %v151
    %v995 = vunpack.c.h.b16 %v151
    %v996 = vunpack.c.l.b16 %v152
    %v997 = vunpack.c.h.b16 %v152
    %v998 = vunpack.c.l.b16 %v153
    %v999 = vunpack.c.h.b16 %v153
    %v1000 = vunpack.c.l.b16 %v154
    %v1001 = vunpack.c.h.b16 %v154
    %v1002 = vunpack.c.l.b16 %v155
    %v1003 = vunpack.c.h.b16 %v155
    %v1004 = vunpack.c.l.b16 %v156
    %v1005 = vunpack.c.h.b16 %v156
    %v1006 = vunpack.c.l.b16 %v157
    %v1007 = vunpack.c.h.b16 %v157
    %v1008 = vunpack.c.l.b16 %v158
    %v1009 = vunpack.c.h.b16 %v158
    %v1010 = vunpack.c.l.b16 %v159
    %v1011 = vunpack.c.h.b16 %v159
    %v1012 = vunpack.c.l.b16 %v160
    %v1013 = vunpack.c.h.b16 %v160
    %v1014 = vunpack.c.l.b16 %v161
    %v1015 = vunpack.c.h.b16 %v161
    %v1016 = vunpack.c.l.b16 %v162
    %v1017 = vunpack.c.h.b16 %v162
    %v1018 = vunpack.c.l.b16 %v163
    %v1019 = vunpack.c.h.b16 %v163
    %v1020 = vunpack.c.l.b16 %v164
    %v1021 = vunpack.c.h.b16 %v164
    %v1022 = vunpack.c.l.b16 %v165
    %v1023 = vunpack.c.h.b16 %v165
    %v1024 = vunpack.c.l.b16 %v166
    %v1025 = vunpack.c.h.b16 %v166
    %v1026 = vunpack.c.l.b16 %v167
    %v1027 = vunpack.c.h.b16 %v167
    %v1028 = vunpack.c.l.b16 %v168
    %v1029 = vunpack.c.h.b16 %v168
    %v1030 = vunpack.c.l.b16 %v169
    %v1031 = vunpack.c.h.b16 %v169
    %v1032 = vunpack.c.l.b16 %v170
    %v1033 = vunpack.c.h.b16 %v170
    %v1034 = vunpack.c.l.b16 %v171
    %v1035 = vunpack.c.h.b16 %v171
    %v1036 = vunpack.c.l.b16 %v172
    %v1037 = vunpack.c.h.b16 %v172
    %v1038 = vunpack.c.l.b16 %v173
    %v1039 = vunpack.c.h.b16 %v173
    %v1040 = vunpack.c.l.b16 %v174
    %v1041 = vunpack.c.h.b16 %v174
    %v1042 = vunpack.c.l.b16 %v175
    %v1043 = vunpack.c.h.b16 %v175
    %v1044 = vunpack.c.l.b16 %v176
    %v1045 = vunpack.c.h.b16 %v176
    %v1046 = vunpack.c.l.b16 %v177
    %v1047 = vunpack.c.h.b16 %v177
    %v1048 = vunpack.c.l.b16 %v178
    %v1049 = vunpack.c.h.b16 %v178
    %v1050 = vunpack.c.l.b16 %v179
    %v1051 = vunpack.c.h.b16 %v179
    %v1052 = vunpack.c.l.b16 %v180
    %v1053 = vunpack.c.h.b16 %v180
    %v1054 = vunpack.c.l.b16 %v181
    %v1055 = vunpack.c.h.b16 %v181
    %v1056 = vunpack.c.l.b16 %v182
    %v1057 = vunpack.c.h.b16 %v182
    %v1058 = vunpack.c.l.b16 %v183
    %v1059 = vunpack.c.h.b16 %v183
    %v1060 = vunpack.c.l.b16 %v184
    %v1061 = vunpack.c.h.b16 %v184
    %v1062 = vunpack.c.l.b16 %v185
    %v1063 = vunpack.c.h.b16 %v185
    %v1064 = vunpack.c.l.b16 %v186
    %v1065 = vunpack.c.h.b16 %v186
    %v1066 = vunpack.c.l.b16 %v187
    %v1067 = vunpack.c.h.b16 %v187
    %v1068 = vunpack.c.l.b16 %v188
    %v1069 = vunpack.c.h.b16 %v188
    %v1070 = vunpack.c.l.b16 %v189
    %v1071 = vunpack.c.h.b16 %v189
    %v1072 = vunpack.c.l.b16 %v190
    %v1073 = vunpack.c.h.b16 %v190
    %v1074 = vunpack.c.l.b16 %v191
    %v1075 = vunpack.c.h.b16 %v191
    %v1076 = vunpack.c.l.b16 %v192
    %v1077 = vunpack.c.h.b16 %v192
    %v1078 = vunpack.c.l.b16 %v193
    %v1079 = vunpack.c.h.b16 %v193
    %v1080 = vunpack.c.l.b16 %v194
    %v1081 = vunpack.c.h.b16 %v194
    %v1082 = vunpack.c.l.b16 %v195
    %v1083 = vunpack.c.h.b16 %v195
    %v1084 = vunpack.c.l.b16 %v196
    %v1085 = vunpack.c.h.b16 %v196
    %v1086 = vunpack.c.l.b16 %v197
    %v1087 = vunpack.c.h.b16 %v197
    %v1088 = vunpack.c.l.b16 %v198
    %v1089 = vunpack.c.h.b16 %v198
    %v1090 = vunpack.c.l.b16 %v199
    %v1091 = vunpack.c.h.b16 %v199
    %v1092 = vunpack.c.l.b16 %v200
    %v1093 = vunpack.c.h.b16 %v200
    %v1094 = vunpack.c.l.b16 %v201
    %v1095 = vunpack.c.h.b16 %v201
    %v1096 = vunpack.c.l.b16 %v202
    %v1097 = vunpack.c.h.b16 %v202
    %v1098 = vunpack.c.l.b16 %v203
    %v1099 = vunpack.c.h.b16 %v203
    %v1100 = vunpack.c.l.b16 %v204
    %v1101 = vunpack.c.h.b16 %v204
    %v1102 = vunpack.c.l.b16 %v205
    %v1103 = vunpack.c.h.b16 %v205
    %v1104 = vunpack.c.l.b16 %v206
    %v1105 = vunpack.c.h.b16 %v206
    %v1106 = vunpack.c.l.b16 %v207
    %v1107 = vunpack.c.h.b16 %v207
    %v1108 = vunpack.c.l.b16 %v208
    %v1109 = vunpack.c.h.b16 %v208
    %v1110 = vunpack.c.l.b16 %v209
    %v1111 = vunpack.c.h.b16 %v209
    %v1112 = vunpack.c.l.b16 %v210
    %v1113 = vunpack.c.h.b16 %v210
    %v1114 = vunpack.c.l.b16 %v211
    %v1115 = vunpack.c.h.b16 %v211
    %v1116 = vunpack.c.l.b16 %v212
    %v1117 = vunpack.c.h.b16 %v212
    %v1118 = vunpack.c.l.b16 %v213
    %v1119 = vunpack.c.h.b16 %v213
    %v1120 = vunpack.c.l.b16 %v214
    %v1121 = vunpack.c.h.b16 %v214
    %v1122 = vunpack.c.l.b16 %v215
    %v1123 = vunpack.c.h.b16 %v215
    %v1124 = vunpack.c.l.b16 %v216
    %v1125 = vunpack.c.h.b16 %v216
    %v1126 = vunpack.c.l.b16 %v217
    %v1127 = vunpack.c.h.b16 %v217
    %v1128 = vunpack.c.l.b16 %v218
    %v1129 = vunpack.c.h.b16 %v218
    %v1130 = vunpack.c.l.b16 %v219
    %v1131 = vunpack.c.h.b16 %v219
    %v1132 = vunpack.c.l.b16 %v220
    %v1133 = vunpack.c.h.b16 %v220
    %v1134 = vunpack.c.l.b16 %v221
    %v1135 = vunpack.c.h.b16 %v221
    %v1136 = vunpack.c.l.b16 %v222
    %v1137 = vunpack.c.h.b16 %v222
    %v1138 = vunpack.c.l.b16 %v223
    %v1139 = vunpack.c.h.b16 %v223
    %v1140 = vunpack.c.l.b16 %v224
    %v1141 = vunpack.c.h.b16 %v224
    %v1142 = vunpack.c.l.b16 %v225
    %v1143 = vunpack.c.h.b16 %v225
    %v1144 = vunpack.c.l.b16 %v226
    %v1145 = vunpack.c.h.b16 %v226
    %v1146 = vunpack.c.l.b16 %v227
    %v1147 = vunpack.c.h.b16 %v227
    %v1148 = vunpack.c.l.b16 %v228
    %v1149 = vunpack.c.h.b16 %v228
    %v1150 = vunpack.c.l.b16 %v229
    %v1151 = vunpack.c.h.b16 %v229
    %v1152 = vunpack.c.l.b16 %v230
    %v1153 = vunpack.c.h.b16 %v230
    %v1154 = vunpack.c.l.b16 %v231
    %v1155 = vunpack.c.h.b16 %v231
    %v1156 = vunpack.c.l.b16 %v232
    %v1157 = vunpack.c.h.b16 %v232
    %v1158 = vunpack.c.l.b16 %v233
    %v1159 = vunpack.c.h.b16 %v233
    %v1160 = vunpack.c.l.b16 %v234
    %v1161 = vunpack.c.h.b16 %v234
    %v1162 = vunpack.c.l.b16 %v235
    %v1163 = vunpack.c.h.b16 %v235
    %v1164 = vunpack.c.l.b16 %v236
    %v1165 = vunpack.c.h.b16 %v236
    %v1166 = vunpack.c.l.b16 %v237
    %v1167 = vunpack.c.h.b16 %v237
    %v1168 = vunpack.c.l.b16 %v238
    %v1169 = vunpack.c.h.b16 %v238
    %v1170 = vunpack.c.l.b16 %v239
    %v1171 = vunpack.c.h.b16 %v239
    %v1172 = vunpack.c.l.b16 %v240
    %v1173 = vunpack.c.h.b16 %v240
    %v1174 = vunpack.c.l.b16 %v241
    %v1175 = vunpack.c.h.b16 %v241
    %v1176 = vunpack.c.l.b16 %v242
    %v1177 = vunpack.c.h.b16 %v242
    %v1178 = vunpack.c.l.b16 %v243
    %v1179 = vunpack.c.h.b16 %v243
    %v1180 = vunpack.c.l.b16 %v244
    %v1181 = vunpack.c.h.b16 %v244
    %v1182 = vunpack.c.l.b16 %v245
    %v1183 = vunpack.c.h.b16 %v245
    %v1184 = vunpack.c.l.b16 %v246
    %v1185 = vunpack.c.h.b16 %v246
    %v1186 = vunpack.c.l.b16 %v247
    %v1187 = vunpack.c.h.b16 %v247
    %v1188 = vunpack.c.l.b16 %v248
    %v1189 = vunpack.c.h.b16 %v248
    %v1190 = vunpack.c.l.b16 %v249
    %v1191 = vunpack.c.h.b16 %v249
    %v1192 = vunpack.c.l.b16 %v250
    %v1193 = vunpack.c.h.b16 %v250
    %v1194 = vunpack.c.l.b16 %v251
    %v1195 = vunpack.c.h.b16 %v251
    %v1196 = vunpack.c.l.b16 %v252
    %v1197 = vunpack.c.h.b16 %v252
    %v1198 = vunpack.c.l.b16 %v253
    %v1199 = vunpack.c.h.b16 %v253
    %v1200 = vunpack.c.l.b16 %v254
    %v1201 = vunpack.c.h.b16 %v254
    %v1202 = vunpack.c.l.b16 %v255
    %v1203 = vunpack.c.h.b16 %v255
    %v1204 = vunpack.c.l.b16 %v256
    %v1205 = vunpack.c.h.b16 %v256
    %v1206 = vunpack.c.l.b16 %v257
    %v1207 = vunpack.c.h.b16 %v257
    %v1208 = vunpack.c.l.b16 %v258
    %v1209 = vunpack.c.h.b16 %v258
    %v1210 = vunpack.c.l.b16 %v259
    %v1211 = vunpack.c.h.b16 %v259
    %v1212 = vunpack.c.l.b16 %v260
    %v1213 = vunpack.c.h.b16 %v260
    %v1214 = vunpack.c.l.b16 %v261
    %v1215 = vunpack.c.h.b16 %v261
    %v1216 = vunpack.c.l.b16 %v262
    %v1217 = vunpack.c.h.b16 %v262
    %v1218 = vunpack.c.l.b16 %v263
    %v1219 = vunpack.c.h.b16 %v263
    %v1220 = vunpack.c.l.b16 %v264
    %v1221 = vunpack.c.h.b16 %v264
    %v1222 = vunpack.c.l.b16 %v265
    %v1223 = vunpack.c.h.b16 %v265
    %v1224 = vunpack.c.l.b16 %v266
    %v1225 = vunpack.c.h.b16 %v266
    %v1226 = vunpack.c.l.b16 %v267
    %v1227 = vunpack.c.h.b16 %v267
    %v1228 = vunpack.c.l.b16 %v268
    %v1229 = vunpack.c.h.b16 %v268
    %v1230 = vunpack.c.l.b16 %v269
    %v1231 = vunpack.c.h.b16 %v269
    %v1232 = vunpack.c.l.b16 %v270
    %v1233 = vunpack.c.h.b16 %v270
    %v1234 = vunpack.c.l.b16 %v271
    %v1235 = vunpack.c.h.b16 %v271
    %v1236 = vunpack.c.l.b16 %v272
    %v1237 = vunpack.c.h.b16 %v272
    %v1238 = vunpack.c.l.b16 %v273
    %v1239 = vunpack.c.h.b16 %v273
    %v1240 = vunpack.c.l.b16 %v274
    %v1241 = vunpack.c.h.b16 %v274
    %v1242 = vunpack.c.l.b16 %v275
    %v1243 = vunpack.c.h.b16 %v275
    %v1244 = vunpack.c.l.b16 %v276
    %v1245 = vunpack.c.h.b16 %v276
    %v1246 = vunpack.c.l.b16 %v277
    %v1247 = vunpack.c.h.b16 %v277
    %v1248 = vunpack.c.l.b16 %v278
    %v1249 = vunpack.c.h.b16 %v278
    %v1250 = vunpack.c.l.b16 %v279
    %v1251 = vunpack.c.h.b16 %v279
    %v1252 = vunpack.c.l.b16 %v280
    %v1253 = vunpack.c.h.b16 %v280
    %v1254 = vunpack.c.l.b16 %v281
    %v1255 = vunpack.c.h.b16 %v281
    %v1256 = vunpack.c.l.b16 %v282
    %v1257 = vunpack.c.h.b16 %v282
    %v1258 = vunpack.c.l.b16 %v283
    %v1259 = vunpack.c.h.b16 %v283
    %v1260 = vunpack.c.l.b16 %v284
    %v1261 = vunpack.c.h.b16 %v284
    %v1262 = vunpack.c.l.b16 %v285
    %v1263 = vunpack.c.h.b16 %v285
    %v1264 = vunpack.c.l.b16 %v286
    %v1265 = vunpack.c.h.b16 %v286
    %v1266 = vunpack.c.l.b16 %v287
    %v1267 = vunpack.c.h.b16 %v287
    %v1268 = vunpack.c.l.b16 %v288
    %v1269 = vunpack.c.h.b16 %v288
    %v1270 = vunpack.c.l.b16 %v289
    %v1271 = vunpack.c.h.b16 %v289
    %v1272 = vunpack.c.l.b16 %v290
    %v1273 = vunpack.c.h.b16 %v290
    %v1274 = vunpack.c.l.b16 %v291
    %v1275 = vunpack.c.h.b16 %v291
    %v1276 = vunpack.c.l.b16 %v292
    %v1277 = vunpack.c.h.b16 %v292
    %v1278 = vunpack.c.l.b16 %v293
    %v1279 = vunpack.c.h.b16 %v293
    %v1280 = vunpack.c.l.b16 %v294
    %v1281 = vunpack.c.h.b16 %v294
    %v1282 = vunpack.c.l.b16 %v295
    %v1283 = vunpack.c.h.b16 %v295
    %v1284 = vunpack.c.l.b16 %v296
    %v1285 = vunpack.c.h.b16 %v296
    %v1286 = vunpack.c.l.b16 %v297
    %v1287 = vunpack.c.h.b16 %v297
    %v1288 = vunpack.c.l.b16 %v298
    %v1289 = vunpack.c.h.b16 %v298
    %v1290 = vunpack.c.l.b16 %v299
    %v1291 = vunpack.c.h.b16 %v299
    %v1292 = vunpack.c.l.b16 %v300
    %v1293 = vunpack.c.h.b16 %v300
    %v1294 = vunpack.c.l.b16 %v301
    %v1295 = vunpack.c.h.b16 %v301
    %v1296 = vunpack.c.l.b16 %v302
    %v1297 = vunpack.c.h.b16 %v302
    %v1298 = vunpack.c.l.b16 %v303
    %v1299 = vunpack.c.h.b16 %v303
    %v1300 = vunpack.c.l.b16 %v304
    %v1301 = vunpack.c.h.b16 %v304
    %v1302 = vunpack.c.l.b16 %v305
    %v1303 = vunpack.c.h.b16 %v305
    %v1304 = vunpack.c.l.b16 %v306
    %v1305 = vunpack.c.h.b16 %v306
    %v1306 = vunpack.c.l.b16 %v307
    %v1307 = vunpack.c.h.b16 %v307
    %v1308 = vunpack.c.l.b16 %v308
    %v1309 = vunpack.c.h.b16 %v308
    %v1310 = vunpack.c.l.b16 %v309
    %v1311 = vunpack.c.h.b16 %v309
    %v1312 = vunpack.c.l.b16 %v310
    %v1313 = vunpack.c.h.b16 %v310
    %v1314 = vunpack.c.l.b16 %v311
    %v1315 = vunpack.c.h.b16 %v311
    %v1316 = vunpack.c.l.b16 %v312
    %v1317 = vunpack.c.h.b16 %v312
    %v1318 = vunpack.c.l.b16 %v313
    %v1319 = vunpack.c.h.b16 %v313
    %v1320 = vunpack.c.l.b16 %v314
    %v1321 = vunpack.c.h.b16 %v314
    %v1322 = vunpack.c.l.b16 %v315
    %v1323 = vunpack.c.h.b16 %v315
    %v1324 = vunpack.c.l.b16 %v316
    %v1325 = vunpack.c.h.b16 %v316
    %v1326 = vunpack.c.l.b16 %v317
    %v1327 = vunpack.c.h.b16 %v317
    %v1328 = vunpack.c.l.b16 %v318
    %v1329 = vunpack.c.h.b16 %v318
    %v1330 = vunpack.c.l.b16 %v319
    %v1331 = vunpack.c.h.b16 %v319
    %v1332 = vunpack.c.l.b16 %v320
    %v1333 = vunpack.c.h.b16 %v320
    %v1334 = vunpack.c.l.b16 %v321
    %v1335 = vunpack.c.h.b16 %v321
    %v1336 = vunpack.c.l.b16 %v322
    %v1337 = vunpack.c.h.b16 %v322
    %v1338 = vunpack.c.l.b16 %v323
    %v1339 = vunpack.c.h.b16 %v323
    %v1340 = vunpack.c.l.b16 %v324
    %v1341 = vunpack.c.h.b16 %v324
    %v1342 = vunpack.c.l.b16 %v325
    %v1343 = vunpack.c.h.b16 %v325
    %v1344 = vunpack.c.l.b16 %v326
    %v1345 = vunpack.c.h.b16 %v326
    %v1346 = vunpack.c.l.b16 %v327
    %v1347 = vunpack.c.h.b16 %v327
    %v1348 = vunpack.c.l.b16 %v328
    %v1349 = vunpack.c.h.b16 %v328
    %v1350 = vunpack.c.l.b16 %v329
    %v1351 = vunpack.c.h.b16 %v329
    %v1352 = vunpack.c.l.b16 %v330
    %v1353 = vunpack.c.h.b16 %v330
    %v1354 = vunpack.c.l.b16 %v331
    %v1355 = vunpack.c.h.b16 %v331
    %v1356 = vunpack.c.l.b16 %v332
    %v1357 = vunpack.c.h.b16 %v332
    %v1358 = vunpack.c.l.b16 %v333
    %v1359 = vunpack.c.h.b16 %v333
    %v1360 = vunpack.c.l.b16 %v334
    %v1361 = vunpack.c.h.b16 %v334
    %v1362 = vunpack.c.l.b16 %v335
    %v1363 = vunpack.c.h.b16 %v335
    %v1364 = vunpack.c.l.b16 %v336
    %v1365 = vunpack.c.h.b16 %v336
    %v1366 = vunpack.c.l.b16 %v337
    %v1367 = vunpack.c.h.b16 %v337
    %v1368 = vunpack.c.l.b16 %v338
    %v1369 = vunpack.c.h.b16 %v338
    %v1370 = vunpack.c.l.b16 %v339
    %v1371 = vunpack.c.h.b16 %v339
    %v1372 = vunpack.c.l.b16 %v340
    %v1373 = vunpack.c.h.b16 %v340
    %v1374 = vunpack.c.l.b16 %v341
    %v1375 = vunpack.c.h.b16 %v341
    %v1376 = vunpack.c.l.b16 %v342
    %v1377 = vunpack.c.h.b16 %v342
    %v1378 = vunpack.c.l.b16 %v343
    %v1379 = vunpack.c.h.b16 %v343
    %v1380 = vunpack.c.l.b16 %v344
    %v1381 = vunpack.c.h.b16 %v344
    %v1382 = vunpack.c.l.b16 %v345
    %v1383 = vunpack.c.h.b16 %v345
    %v1384 = vunpack.c.l.b16 %v346
    %v1385 = vunpack.c.h.b16 %v346
    %v1386 = vunpack.c.l.b16 %v347
    %v1387 = vunpack.c.h.b16 %v347
    %v1388 = vunpack.c.l.b16 %v348
    %v1389 = vunpack.c.h.b16 %v348
    %v1390 = vunpack.c.l.b16 %v349
    %v1391 = vunpack.c.h.b16 %v349
    %v1392 = vunpack.c.l.b16 %v350
    %v1393 = vunpack.c.h.b16 %v350
    %v1394 = vunpack.c.l.b16 %v351
    %v1395 = vunpack.c.h.b16 %v351
    %v1396 = vunpack.c.l.b16 %v352
    %v1397 = vunpack.c.h.b16 %v352
    %v1398 = vunpack.c.l.b16 %v353
    %v1399 = vunpack.c.h.b16 %v353
    %v1400 = vunpack.c.l.b16 %v354
    %v1401 = vunpack.c.h.b16 %v354
    %v1402 = vunpack.c.l.b16 %v355
    %v1403 = vunpack.c.h.b16 %v355
    %v1404 = vunpack.c.l.b16 %v356
    %v1405 = vunpack.c.h.b16 %v356
    %v1406 = vunpack.c.l.b16 %v357
    %v1407 = vunpack.c.h.b16 %v357
    %v1408 = vunpack.c.l.b16 %v358
    %v1409 = vunpack.c.h.b16 %v358
    %v1410 = vunpack.c.l.b16 %v359
    %v1411 = vunpack.c.h.b16 %v359
    %v1412 = vunpack.c.l.b16 %v360
    %v1413 = vunpack.c.h.b16 %v360
    %v1414 = vunpack.c.l.b16 %v361
    %v1415 = vunpack.c.h.b16 %v361
    %v1416 = vunpack.c.l.b16 %v362
    %v1417 = vunpack.c.h.b16 %v362
    %v1418 = vunpack.c.l.b16 %v363
    %v1419 = vunpack.c.h.b16 %v363
    %v1420 = vunpack.c.l.b16 %v364
    %v1421 = vunpack.c.h.b16 %v364
    %v1422 = vunpack.c.l.b16 %v365
    %v1423 = vunpack.c.h.b16 %v365
    %v1424 = vunpack.c.l.b16 %v366
    %v1425 = vunpack.c.h.b16 %v366
    %v1426 = vunpack.c.l.b16 %v367
    %v1427 = vunpack.c.h.b16 %v367
    %v1428 = vunpack.c.l.b16 %v368
    %v1429 = vunpack.c.h.b16 %v368
    %v1430 = vunpack.c.l.b16 %v369
    %v1431 = vunpack.c.h.b16 %v369
    %v1432 = vunpack.c.l.b16 %v370
    %v1433 = vunpack.c.h.b16 %v370
    %v1434 = vunpack.c.l.b16 %v371
    %v1435 = vunpack.c.h.b16 %v371
    %v1436 = vunpack.c.l.b16 %v372
    %v1437 = vunpack.c.h.b16 %v372
    %v1438 = vunpack.c.l.b16 %v373
    %v1439 = vunpack.c.h.b16 %v373
    %v1440 = vunpack.c.l.b16 %v374
    %v1441 = vunpack.c.h.b16 %v374
    %v1442 = vunpack.c.l.b16 %v375
    %v1443 = vunpack.c.h.b16 %v375
    %v1444 = vunpack.c.l.b16 %v376
    %v1445 = vunpack.c.h.b16 %v376
    %v1446 = vunpack.c.l.b16 %v377
    %v1447 = vunpack.c.h.b16 %v377
    %v1448 = vunpack.c.l.b16 %v378
    %v1449 = vunpack.c.h.b16 %v378
    %v1450 = vunpack.c.l.b16 %v379
    %v1451 = vunpack.c.h.b16 %v379
    %v1452 = vunpack.c.l.b16 %v380
    %v1453 = vunpack.c.h.b16 %v380
    %v1454 = vunpack.c.l.b16 %v381
    %v1455 = vunpack.c.h.b16 %v381
    %v1456 = vunpack.c.l.b16 %v382
    %v1457 = vunpack.c.h.b16 %v382
    %v1458 = vunpack.c.l.b16 %v383
    %v1459 = vunpack.c.h.b16 %v383
    %v1460 = vunpack.c.l.b16 %v384
    %v1461 = vunpack.c.h.b16 %v384
    %v1462 = vunpack.c.l.b16 %v385
    %v1463 = vunpack.c.h.b16 %v385
    %v1464 = vunpack.c.l.b16 %v386
    %v1465 = vunpack.c.h.b16 %v386
    %v1466 = vunpack.c.l.b16 %v387
    %v1467 = vunpack.c.h.b16 %v387
    %v1468 = vunpack.c.l.b16 %v388
    %v1469 = vunpack.c.h.b16 %v388
    %v1470 = vunpack.c.l.b16 %v389
    %v1471 = vunpack.c.h.b16 %v389
    %v1472 = vunpack.c.l.b16 %v390
    %v1473 = vunpack.c.h.b16 %v390
    %v1474 = vunpack.c.l.b16 %v391
    %v1475 = vunpack.c.h.b16 %v391
    %v1476 = vunpack.c.l.b16 %v392
    %v1477 = vunpack.c.h.b16 %v392
    %v1478 = vunpack.c.l.b16 %v393
    %v1479 = vunpack.c.h.b16 %v393
    %v1480 = vunpack.c.l.b16 %v394
    %v1481 = vunpack.c.h.b16 %v394
    %v1482 = vunpack.c.l.b16 %v395
    %v1483 = vunpack.c.h.b16 %v395
    %v1484 = vunpack.c.l.b16 %v396
    %v1485 = vunpack.c.h.b16 %v396
    %v1486 = vunpack.c.l.b16 %v397
    %v1487 = vunpack.c.h.b16 %v397
    %v1488 = vunpack.c.l.b16 %v398
    %v1489 = vunpack.c.h.b16 %v398
    %v1490 = vunpack.c.l.b16 %v399
    %v1491 = vunpack.c.h.b16 %v399
    %v1492 = vunpack.c.l.b16 %v400
    %v1493 = vunpack.c.h.b16 %v400
    %v1494 = vunpack.c.l.b16 %v401
    %v1495 = vunpack.c.h.b16 %v401
    %v1496 = vunpack.c.l.b16 %v402
    %v1497 = vunpack.c.h.b16 %v402
    %v1498 = vunpack.c.l.b16 %v403
    %v1499 = vunpack.c.h.b16 %v403
    %v1500 = vunpack.c.l.b16 %v404
    %v1501 = vunpack.c.h.b16 %v404
    %v1502 = vunpack.c.l.b16 %v405
    %v1503 = vunpack.c.h.b16 %v405
    %v1504 = vunpack.c.l.b16 %v406
    %v1505 = vunpack.c.h.b16 %v406
    %v1506 = vunpack.c.l.b16 %v407
    %v1507 = vunpack.c.h.b16 %v407
    %v1508 = vunpack.c.l.b16 %v408
    %v1509 = vunpack.c.h.b16 %v408
    %v1510 = vunpack.c.l.b16 %v409
    %v1511 = vunpack.c.h.b16 %v409
    %v1512 = vunpack.c.l.b16 %v410
    %v1513 = vunpack.c.h.b16 %v410
    %v1514 = vunpack.c.l.b16 %v411
    %v1515 = vunpack.c.h.b16 %v411
    %v1516 = vunpack.c.l.b16 %v412
    %v1517 = vunpack.c.h.b16 %v412
    %v1518 = vunpack.c.l.b16 %v413
    %v1519 = vunpack.c.h.b16 %v413
    %v1520 = vunpack.c.l.b16 %v414
    %v1521 = vunpack.c.h.b16 %v414
    %v1522 = vunpack.c.l.b16 %v415
    %v1523 = vunpack.c.h.b16 %v415
    %v1524 = vunpack.c.l.b16 %v416
    %v1525 = vunpack.c.h.b16 %v416
    %v1526 = vunpack.c.l.b16 %v417
    %v1527 = vunpack.c.h.b16 %v417
    %v1528 = vunpack.c.l.b16 %v418
    %v1529 = vunpack.c.h.b16 %v418
    %v1530 = vunpack.c.l.b16 %v419
    %v1531 = vunpack.c.h.b16 %v419
    %v1532 = vunpack.c.l.b16 %v420
    %v1533 = vunpack.c.h.b16 %v420
    %v1534 = vunpack.c.l.b16 %v421
    %v1535 = vunpack.c.h.b16 %v421
    %v1536 = vunpack.c.l.b16 %v422
    %v1537 = vunpack.c.h.b16 %v422
    %v1538 = vunpack.c.l.b16 %v423
    %v1539 = vunpack.c.h.b16 %v423
    %v1540 = vunpack.c.l.b16 %v424
    %v1541 = vunpack.c.h.b16 %v424
    %v1542 = vunpack.c.l.b16 %v425
    %v1543 = vunpack.c.h.b16 %v425
    %v1544 = vunpack.c.l.b16 %v426
    %v1545 = vunpack.c.h.b16 %v426
    %v1546 = vunpack.c.l.b16 %v427
    %v1547 = vunpack.c.h.b16 %v427
    %v1548 = vunpack.c.l.b16 %v428
    %v1549 = vunpack.c.h.b16 %v428
    %v1550 = vunpack.c.l.b16 %v429
    %v1551 = vunpack.c.h.b16 %v429
    %v1552 = vunpack.c.l.b16 %v430
    %v1553 = vunpack.c.h.b16 %v430
    %v1554 = vunpack.c.l.b16 %v431
    %v1555 = vunpack.c.h.b16 %v431
    %v1556 = vunpack.c.l.b16 %v432
    %v1557 = vunpack.c.h.b16 %v432
    %v1558 = vunpack.c.l.b16 %v433
    %v1559 = vunpack.c.h.b16 %v433
    %v1560 = vunpack.c.l.b16 %v434
    %v1561 = vunpack.c.h.b16 %v434
    %v1562 = vunpack.c.l.b16 %v435
    %v1563 = vunpack.c.h.b16 %v435
    %v1564 = vunpack.c.l.b16 %v436
    %v1565 = vunpack.c.h.b16 %v436
    %v1566 = vunpack.c.l.b16 %v437
    %v1567 = vunpack.c.h.b16 %v437
    %v1568 = vunpack.c.l.b16 %v438
    %v1569 = vunpack.c.h.b16 %v438
    %v1570 = vunpack.c.l.b16 %v439
    %v1571 = vunpack.c.h.b16 %v439
    %v1572 = vunpack.c.l.b16 %v440
    %v1573 = vunpack.c.h.b16 %v440
    %v1574 = vunpack.c.l.b16 %v441
    %v1575 = vunpack.c.h.b16 %v441
    %v1576 = vunpack.c.l.b16 %v442
    %v1577 = vunpack.c.h.b16 %v442
    %v1578 = vunpack.c.l.b16 %v443
    %v1579 = vunpack.c.h.b16 %v443
    %v1580 = vunpack.c.l.b16 %v444
    %v1581 = vunpack.c.h.b16 %v444
    %v1582 = vunpack.c.l.b16 %v445
    %v1583 = vunpack.c.h.b16 %v445
    %v1584 = vunpack.c.l.b16 %v446
    %v1585 = vunpack.c.h.b16 %v446
    %v1586 = vunpack.c.l.b16 %v447
    %v1587 = vunpack.c.h.b16 %v447
    %v1588 = vunpack.c.l.b16 %v448
    %v1589 = vunpack.c.h.b16 %v448
    %v1590 = vunpack.c.l.b16 %v449
    %v1591 = vunpack.c.h.b16 %v449
    %v1592 = vunpack.c.l.b16 %v450
    %v1593 = vunpack.c.h.b16 %v450
    %v1594 = vunpack.c.l.b16 %v451
    %v1595 = vunpack.c.h.b16 %v451
    %v1596 = vunpack.c.l.b16 %v452
    %v1597 = vunpack.c.h.b16 %v452
    %v1598 = vunpack.c.l.b16 %v453
    %v1599 = vunpack.c.h.b16 %v453
    %v1600 = vunpack.c.l.b16 %v454
    %v1601 = vunpack.c.h.b16 %v454
    %v1602 = vunpack.c.l.b16 %v455
    %v1603 = vunpack.c.h.b16 %v455
    %v1604 = vunpack.c.l.b16 %v456
    %v1605 = vunpack.c.h.b16 %v456
    %v1606 = vunpack.c.l.b16 %v457
    %v1607 = vunpack.c.h.b16 %v457
    %v1608 = vunpack.c.l.b16 %v458
    %v1609 = vunpack.c.h.b16 %v458
    %v1610 = vunpack.c.l.b16 %v459
    %v1611 = vunpack.c.h.b16 %v459
    %v1612 = vunpack.c.l.b16 %v460
    %v1613 = vunpack.c.h.b16 %v460
    %v1614 = vunpack.c.l.b16 %v461
    %v1615 = vunpack.c.h.b16 %v461
    %v1616 = vunpack.c.l.b16 %v462
    %v1617 = vunpack.c.h.b16 %v462
    %v1618 = vunpack.c.l.b16 %v463
    %v1619 = vunpack.c.h.b16 %v463
    %v1620 = vunpack.c.l.b16 %v464
    %v1621 = vunpack.c.h.b16 %v464
    %v1622 = vunpack.c.l.b16 %v465
    %v1623 = vunpack.c.h.b16 %v465
    %v1624 = vunpack.c.l.b16 %v466
    %v1625 = vunpack.c.h.b16 %v466
    %v1626 = vunpack.c.l.b16 %v467
    %v1627 = vunpack.c.h.b16 %v467
    %v1628 = vunpack.c.l.b16 %v468
    %v1629 = vunpack.c.h.b16 %v468
    %v1630 = vunpack.c.l.b16 %v469
    %v1631 = vunpack.c.h.b16 %v469
    %v1632 = vunpack.c.l.b16 %v470
    %v1633 = vunpack.c.h.b16 %v470
    %v1634 = vunpack.c.l.b16 %v471
    %v1635 = vunpack.c.h.b16 %v471
    %v1636 = vunpack.c.l.b16 %v472
    %v1637 = vunpack.c.h.b16 %v472
    %v1638 = vunpack.c.l.b16 %v473
    %v1639 = vunpack.c.h.b16 %v473
    %v1640 = vunpack.c.l.b16 %v474
    %v1641 = vunpack.c.h.b16 %v474
    %v1642 = vunpack.c.l.b16 %v475
    %v1643 = vunpack.c.h.b16 %v475
    %v1644 = vunpack.c.l.b16 %v476
    %v1645 = vunpack.c.h.b16 %v476
    %v1646 = vunpack.c.l.b16 %v477
    %v1647 = vunpack.c.h.b16 %v477
    %v1648 = vunpack.c.l.b16 %v478
    %v1649 = vunpack.c.h.b16 %v478
    %v1650 = vunpack.c.l.b16 %v479
    %v1651 = vunpack.c.h.b16 %v479
    %v1652 = vunpack.c.l.b16 %v480
    %v1653 = vunpack.c.h.b16 %v480
    %v1654 = vunpack.c.l.b16 %v481
    %v1655 = vunpack.c.h.b16 %v481
    %v1656 = vunpack.c.l.b16 %v482
    %v1657 = vunpack.c.h.b16 %v482
    %v1658 = vunpack.c.l.b16 %v483
    %v1659 = vunpack.c.h.b16 %v483
    %v1660 = vunpack.c.l.b16 %v484
    %v1661 = vunpack.c.h.b16 %v484
    %v1662 = vunpack.c.l.b16 %v485
    %v1663 = vunpack.c.h.b16 %v485
    %v1664 = vunpack.c.l.b16 %v486
    %v1665 = vunpack.c.h.b16 %v486
    %v1666 = vunpack.c.l.b16 %v487
    %v1667 = vunpack.c.h.b16 %v487
    %v1668 = vunpack.c.l.b16 %v488
    %v1669 = vunpack.c.h.b16 %v488
    %v1670 = vunpack.c.l.b16 %v489
    %v1671 = vunpack.c.h.b16 %v489
    %v1672 = vunpack.c.l.b16 %v490
    %v1673 = vunpack.c.h.b16 %v490
    %v1674 = vunpack.c.l.b16 %v491
    %v1675 = vunpack.c.h.b16 %v491
    %v1676 = vunpack.c.l.b16 %v492
    %v1677 = vunpack.c.h.b16 %v492
    %v1678 = vunpack.c.l.b16 %v493
    %v1679 = vunpack.c.h.b16 %v493
    %v1680 = vunpack.c.l.b16 %v494
    %v1681 = vunpack.c.h.b16 %v494
    %v1682 = vunpack.c.l.b16 %v495
    %v1683 = vunpack.c.h.b16 %v495
    %v1684 = vunpack.c.l.b16 %v496
    %v1685 = vunpack.c.h.b16 %v496
    %v1686 = vunpack.c.l.b16 %v497
    %v1687 = vunpack.c.h.b16 %v497
    %v1688 = vunpack.c.l.b16 %v498
    %v1689 = vunpack.c.h.b16 %v498
    %v1690 = vunpack.c.l.b16 %v499
    %v1691 = vunpack.c.h.b16 %v499
    %v1692 = vunpack.c.l.b16 %v500
    %v1693 = vunpack.c.h.b16 %v500
    %v1694 = vunpack.c.l.b16 %v501
    %v1695 = vunpack.c.h.b16 %v501
    %v1696 = vunpack.c.l.b16 %v502
    %v1697 = vunpack.c.h.b16 %v502
    %v1698 = vunpack.c.l.b16 %v503
    %v1699 = vunpack.c.h.b16 %v503
    %v1700 = vunpack.c.l.b16 %v504
    %v1701 = vunpack.c.h.b16 %v504
    %v1702 = vunpack.c.l.b16 %v505
    %v1703 = vunpack.c.h.b16 %v505
    %v1704 = vunpack.c.l.b16 %v506
    %v1705 = vunpack.c.h.b16 %v506
    %v1706 = vunpack.c.l.b16 %v507
    %v1707 = vunpack.c.h.b16 %v507
    %v1708 = vunpack.c.l.b16 %v508
    %v1709 = vunpack.c.h.b16 %v508
    %v1710 = vunpack.c.l.b16 %v509
    %v1711 = vunpack.c.h.b16 %v509
    %v1712 = vunpack.c.l.b16 %v510
    %v1713 = vunpack.c.h.b16 %v510
    %v1714 = vunpack.c.l.b16 %v511
    %v1715 = vunpack.c.h.b16 %v511
    %v1716 = vunpack.c.l.b16 %v512
    %v1717 = vunpack.c.h.b16 %v512
    %v1718 = vunpack.c.l.b16 %v513
    %v1719 = vunpack.c.h.b16 %v513
    %v1720 = vunpack.c.l.b16 %v514
    %v1721 = vunpack.c.h.b16 %v514
    %v1722 = vunpack.c.l.b16 %v515
    %v1723 = vunpack.c.h.b16 %v515
    %v1724 = vunpack.c.l.b16 %v516
    %v1725 = vunpack.c.h.b16 %v516
    %v1726 = vunpack.c.l.b16 %v517
    %v1727 = vunpack.c.h.b16 %v517
    %v1728 = vunpack.c.l.b16 %v518
    %v1729 = vunpack.c.h.b16 %v518
    %v1730 = vunpack.c.l.b16 %v519
    %v1731 = vunpack.c.h.b16 %v519
    %v1732 = vunpack.c.l.b16 %v520
    %v1733 = vunpack.c.h.b16 %v520
    %v1734 = vunpack.c.l.b16 %v521
    %v1735 = vunpack.c.h.b16 %v521
    %v1736 = vunpack.c.l.b16 %v522
    %v1737 = vunpack.c.h.b16 %v522
    %v1738 = vunpack.c.l.b16 %v523
    %v1739 = vunpack.c.h.b16 %v523
    %v1740 = vunpack.c.l.b16 %v524
    %v1741 = vunpack.c.h.b16 %v524
    %v1742 = vunpack.c.l.b16 %v525
    %v1743 = vunpack.c.h.b16 %v525
    %v1744 = vunpack.c.l.b16 %v526
    %v1745 = vunpack.c.h.b16 %v526
    %v1746 = vunpack.c.l.b16 %v527
    %v1747 = vunpack.c.h.b16 %v527
    %v1748 = vunpack.c.l.b16 %v528
    %v1749 = vunpack.c.h.b16 %v528
    %v1750 = vunpack.c.l.b16 %v529
    %v1751 = vunpack.c.h.b16 %v529
    %v1752 = vpack.c.b16 %v956, %v952
    %v1753 = vpack.c.b16 %v957, %v953
    %v1754 = vpack.c.b16 %v958, %v954
    %v1755 = vpack.c.b16 %v959, %v955
    %v1756 = vpack.c.b16 %v964, %v960
    %v1757 = vpack.c.b16 %v965, %v961
    %v1758 = vpack.c.b16 %v966, %v962
    %v1759 = vpack.c.b16 %v967, %v963
    %v1760 = vpack.c.b16 %v972, %v968
    %v1761 = vpack.c.b16 %v973, %v969
    %v1762 = vpack.c.b16 %v974, %v970
    %v1763 = vpack.c.b16 %v975, %v971
    %v1764 = vpack.c.b16 %v980, %v976
    %v1765 = vpack.c.b16 %v981, %v977
    %v1766 = vpack.c.b16 %v982, %v978
    %v1767 = vpack.c.b16 %v983, %v979
    %v1768 = vpack.c.b16 %v988, %v984
    %v1769 = vpack.c.b16 %v989, %v985
    %v1770 = vpack.c.b16 %v990, %v986
    %v1771 = vpack.c.b16 %v991, %v987
    %v1772 = vpack.c.b16 %v996, %v992
    %v1773 = vpack.c.b16 %v997, %v993
    %v1774 = vpack.c.b16 %v998, %v994
    %v1775 = vpack.c.b16 %v999, %v995
    %v1776 = vpack.c.b16 %v1004, %v1000
    %v1777 = vpack.c.b16 %v1005, %v1001
    %v1778 = vpack.c.b16 %v1006, %v1002
    %v1779 = vpack.c.b16 %v1007, %v1003
    %v1780 = vpack.c.b16 %v1012, %v1008
    %v1781 = vpack.c.b16 %v1013, %v1009
    %v1782 = vpack.c.b16 %v1014, %v1010
    %v1783 = vpack.c.b16 %v1015, %v1011
    %v1784 = vpack.c.b16 %v1020, %v1016
    %v1785 = vpack.c.b16 %v1021, %v1017
    %v1786 = vpack.c.b16 %v1022, %v1018
    %v1787 = vpack.c.b16 %v1023, %v1019
    %v1788 = vpack.c.b16 %v1028, %v1024
    %v1789 = vpack.c.b16 %v1029, %v1025
    %v1790 = vpack.c.b16 %v1030, %v1026
    %v1791 = vpack.c.b16 %v1031, %v1027
    %v1792 = vpack.c.b16 %v1036, %v1032
    %v1793 = vpack.c.b16 %v1037, %v1033
    %v1794 = vpack.c.b16 %v1038, %v1034
    %v1795 = vpack.c.b16 %v1039, %v1035
    %v1796 = vpack.c.b16 %v1044, %v1040
    %v1797 = vpack.c.b16 %v1045, %v1041
    %v1798 = vpack.c.b16 %v1046, %v1042
    %v1799 = vpack.c.b16 %v1047, %v1043
    %v1800 = vpack.c.b16 %v1052, %v1048
    %v1801 = vpack.c.b16 %v1053, %v1049
    %v1802 = vpack.c.b16 %v1054, %v1050
    %v1803 = vpack.c.b16 %v1055, %v1051
    %v1804 = vpack.c.b16 %v1060, %v1056
    %v1805 = vpack.c.b16 %v1061, %v1057
    %v1806 = vpack.c.b16 %v1062, %v1058
    %v1807 = vpack.c.b16 %v1063, %v1059
    %v1808 = vpack.c.b16 %v1068, %v1064
    %v1809 = vpack.c.b16 %v1069, %v1065
    %v1810 = vpack.c.b16 %v1070, %v1066
    %v1811 = vpack.c.b16 %v1071, %v1067
    %v1812 = vpack.c.b16 %v1076, %v1072
    %v1813 = vpack.c.b16 %v1077, %v1073
    %v1814 = vpack.c.b16 %v1078, %v1074
    %v1815 = vpack.c.b16 %v1079, %v1075
    %v1816 = vpack.c.b16 %v1084, %v1080
    %v1817 = vpack.c.b16 %v1085, %v1081
    %v1818 = vpack.c.b16 %v1086, %v1082
    %v1819 = vpack.c.b16 %v1087, %v1083
    %v1820 = vpack.c.b16 %v1092, %v1088
    %v1821 = vpack.c.b16 %v1093, %v1089
    %v1822 = vpack.c.b16 %v1094, %v1090
    %v1823 = vpack.c.b16 %v1095, %v1091
    %v1824 = vpack.c.b16 %v1100, %v1096
    %v1825 = vpack.c.b16 %v1101, %v1097
    %v1826 = vpack.c.b16 %v1102, %v1098
    %v1827 = vpack.c.b16 %v1103, %v1099
    %v1828 = vpack.c.b16 %v1108, %v1104
    %v1829 = vpack.c.b16 %v1109, %v1105
    %v1830 = vpack.c.b16 %v1110, %v1106
    %v1831 = vpack.c.b16 %v1111, %v1107
    %v1832 = vpack.c.b16 %v1116, %v1112
    %v1833 = vpack.c.b16 %v1117, %v1113
    %v1834 = vpack.c.b16 %v1118, %v1114
    %v1835 = vpack.c.b16 %v1119, %v1115
    %v1836 = vpack.c.b16 %v1124, %v1120
    %v1837 = vpack.c.b16 %v1125, %v1121
    %v1838 = vpack.c.b16 %v1126, %v1122
    %v1839 = vpack.c.b16 %v1127, %v1123
    %v1840 = vpack.c.b16 %v1132, %v1128
    %v1841 = vpack.c.b16 %v1133, %v1129
    %v1842 = vpack.c.b16 %v1134, %v1130
    %v1843 = vpack.c.b16 %v1135, %v1131
    %v1844 = vpack.c.b16 %v1140, %v1136
    %v1845 = vpack.c.b16 %v1141, %v1137
    %v1846 = vpack.c.b16 %v1142, %v1138
    %v1847 = vpack.c.b16 %v1143, %v1139
    %v1848 = vpack.c.b16 %v1148, %v1144
    %v1849 = vpack.c.b16 %v1149, %v1145
    %v1850 = vpack.c.b16 %v1150, %v1146
    %v1851 = vpack.c.b16 %v1151, %v1147
    %v1852 = vpack.c.b16 %v1156, %v1152
    %v1853 = vpack.c.b16 %v1157, %v1153
    %v1854 = vpack.c.b16 %v1158, %v1154
    %v1855 = vpack.c.b16 %v1159, %v1155
    %v1856 = vpack.c.b16 %v1164, %v1160
    %v1857 = vpack.c.b16 %v1165, %v1161
    %v1858 = vpack.c.b16 %v1166, %v1162
    %v1859 = vpack.c.b16 %v1167, %v1163
    %v1860 = vpack.c.b16 %v1172, %v1168
    %v1861 = vpack.c.b16 %v1173, %v1169
    %v1862 = vpack.c.b16 %v1174, %v1170
    %v1863 = vpack.c.b16 %v1175, %v1171
    %v1864 = vpack.c.b16 %v1180, %v1176
    %v1865 = vpack.c.b16 %v1181, %v1177
    %v1866 = vpack.c.b16 %v1182, %v1178
    %v1867 = vpack.c.b16 %v1183, %v1179
    %v1868 = vpack.c.b16 %v1188, %v1184
    %v1869 = vpack.c.b16 %v1189, %v1185
    %v1870 = vpack.c.b16 %v1190, %v1186
    %v1871 = vpack.c.b16 %v1191, %v1187
    %v1872 = vpack.c.b16 %v1196, %v1192
    %v1873 = vpack.c.b16 %v1197, %v1193
    %v1874 = vpack.c.b16 %v1198, %v1194
    %v1875 = vpack.c.b16 %v1199, %v1195
    %v1876 = vpack.c.b16 %v1204, %v1200
    %v1877 = vpack.c.b16 %v1205, %v1201
    %v1878 = vpack.c.b16 %v1206, %v1202
    %v1879 = vpack.c.b16 %v1207, %v1203
    %v1880 = vpack.c.b16 %v1212, %v1208
    %v1881 = vpack.c.b16 %v1213, %v1209
    %v1882 = vpack.c.b16 %v1214, %v1210
    %v1883 = vpack.c.b16 %v1215, %v1211
    %v1884 = vpack.c.b16 %v1220, %v1216
    %v1885 = vpack.c.b16 %v1221, %v1217
    %v1886 = vpack.c.b16 %v1222, %v1218
    %v1887 = vpack.c.b16 %v1223, %v1219
    %v1888 = vpack.c.b16 %v1228, %v1224
    %v1889 = vpack.c.b16 %v1229, %v1225
    %v1890 = vpack.c.b16 %v1230, %v1226
    %v1891 = vpack.c.b16 %v1231, %v1227
    %v1892 = vpack.c.b16 %v1236, %v1232
    %v1893 = vpack.c.b16 %v1237, %v1233
    %v1894 = vpack.c.b16 %v1238, %v1234
    %v1895 = vpack.c.b16 %v1239, %v1235
    %v1896 = vpack.c.b16 %v1244, %v1240
    %v1897 = vpack.c.b16 %v1245, %v1241
    %v1898 = vpack.c.b16 %v1246, %v1242
    %v1899 = vpack.c.b16 %v1247, %v1243
    %v1900 = vpack.c.b16 %v1252, %v1248
    %v1901 = vpack.c.b16 %v1253, %v1249
    %v1902 = vpack.c.b16 %v1254, %v1250
    %v1903 = vpack.c.b16 %v1255, %v1251
    %v1904 = vpack.c.b16 %v1260, %v1256
    %v1905 = vpack.c.b16 %v1261, %v1257
    %v1906 = vpack.c.b16 %v1262, %v1258
    %v1907 = vpack.c.b16 %v1263, %v1259
    %v1908 = vpack.c.b16 %v1268, %v1264
    %v1909 = vpack.c.b16 %v1269, %v1265
    %v1910 = vpack.c.b16 %v1270, %v1266
    %v1911 = vpack.c.b16 %v1271, %v1267
    %v1912 = vpack.c.b16 %v1276, %v1272
    %v1913 = vpack.c.b16 %v1277, %v1273
    %v1914 = vpack.c.b16 %v1278, %v1274
    %v1915 = vpack.c.b16 %v1279, %v1275
    %v1916 = vpack.c.b16 %v1284, %v1280
    %v1917 = vpack.c.b16 %v1285, %v1281
    %v1918 = vpack.c.b16 %v1286, %v1282
    %v1919 = vpack.c.b16 %v1287, %v1283
    %v1920 = vpack.c.b16 %v1292, %v1288
    %v1921 = vpack.c.b16 %v1293, %v1289
    %v1922 = vpack.c.b16 %v1294, %v1290
    %v1923 = vpack.c.b16 %v1295, %v1291
    %v1924 = vpack.c.b16 %v1300, %v1296
    %v1925 = vpack.c.b16 %v1301, %v1297
    %v1926 = vpack.c.b16 %v1302, %v1298
    %v1927 = vpack.c.b16 %v1303, %v1299
    %v1928 = vpack.c.b16 %v1308, %v1304
    %v1929 = vpack.c.b16 %v1309, %v1305
    %v1930 = vpack.c.b16 %v1310, %v1306
    %v1931 = vpack.c.b16 %v1311, %v1307
    %v1932 = vpack.c.b16 %v1316, %v1312
    %v1933 = vpack.c.b16 %v1317, %v1313
    %v1934 = vpack.c.b16 %v1318, %v1314
    %v1935 = vpack.c.b16 %v1319, %v1315
    %v1936 = vpack.c.b16 %v1324, %v1320
    %v1937 = vpack.c.b16 %v1325, %v1321
    %v1938 = vpack.c.b16 %v1326, %v1322
    %v1939 = vpack.c.b16 %v1327, %v1323
    %v1940 = vpack.c.b16 %v1332, %v1328
    %v1941 = vpack.c.b16 %v1333, %v1329
    %v1942 = vpack.c.b16 %v1334, %v1330
    %v1943 = vpack.c.b16 %v1335, %v1331
    %v1944 = vpack.c.b16 %v1340, %v1336
    %v1945 = vpack.c.b16 %v1341, %v1337
    %v1946 = vpack.c.b16 %v1342, %v1338
    %v1947 = vpack.c.b16 %v1343, %v1339
    %v1948 = vpack.c.b16 %v1348, %v1344
    %v1949 = vpack.c.b16 %v1349, %v1345
    %v1950 = vpack.c.b16 %v1350, %v1346
    %v1951 = vpack.c.b16 %v1351, %v1347
    %v1952 = vpack.c.b16 %v1356, %v1352
    %v1953 = vpack.c.b16 %v1357, %v1353
    %v1954 = vpack.c.b16 %v1358, %v1354
    %v1955 = vpack.c.b16 %v1359, %v1355
    %v1956 = vpack.c.b16 %v1364, %v1360
    %v1957 = vpack.c.b16 %v1365, %v1361
    %v1958 = vpack.c.b16 %v1366, %v1362
    %v1959 = vpack.c.b16 %v1367, %v1363
    %v1960 = vpack.c.b16 %v1372, %v1368
    %v1961 = vpack.c.b16 %v1373, %v1369
    %v1962 = vpack.c.b16 %v1374, %v1370
    %v1963 = vpack.c.b16 %v1375, %v1371
    %v1964 = vpack.c.b16 %v1380, %v1376
    %v1965 = vpack.c.b16 %v1381, %v1377
    %v1966 = vpack.c.b16 %v1382, %v1378
    %v1967 = vpack.c.b16 %v1383, %v1379
    %v1968 = vpack.c.b16 %v1388, %v1384
    %v1969 = vpack.c.b16 %v1389, %v1385
    %v1970 = vpack.c.b16 %v1390, %v1386
    %v1971 = vpack.c.b16 %v1391, %v1387
    %v1972 = vpack.c.b16 %v1396, %v1392
    %v1973 = vpack.c.b16 %v1397, %v1393
    %v1974 = vpack.c.b16 %v1398, %v1394
    %v1975 = vpack.c.b16 %v1399, %v1395
    %v1976 = vpack.c.b16 %v1404, %v1400
    %v1977 = vpack.c.b16 %v1405, %v1401
    %v1978 = vpack.c.b16 %v1406, %v1402
    %v1979 = vpack.c.b16 %v1407, %v1403
    %v1980 = vpack.c.b16 %v1412, %v1408
    %v1981 = vpack.c.b16 %v1413, %v1409
    %v1982 = vpack.c.b16 %v1414, %v1410
    %v1983 = vpack.c.b16 %v1415, %v1411
    %v1984 = vpack.c.b16 %v1420, %v1416
    %v1985 = vpack.c.b16 %v1421, %v1417
    %v1986 = vpack.c.b16 %v1422, %v1418
    %v1987 = vpack.c.b16 %v1423, %v1419
    %v1988 = vpack.c.b16 %v1428, %v1424
    %v1989 = vpack.c.b16 %v1429, %v1425
    %v1990 = vpack.c.b16 %v1430, %v1426
    %v1991 = vpack.c.b16 %v1431, %v1427
    %v1992 = vpack.c.b16 %v1436, %v1432
    %v1993 = vpack.c.b16 %v1437, %v1433
    %v1994 = vpack.c.b16 %v1438, %v1434
    %v1995 = vpack.c.b16 %v1439, %v1435
    %v1996 = vpack.c.b16 %v1444, %v1440
    %v1997 = vpack.c.b16 %v1445, %v1441
    %v1998 = vpack.c.b16 %v1446, %v1442
    %v1999 = vpack.c.b16 %v1447, %v1443
    %v2000 = vpack.c.b16 %v1452, %v1448
    %v2001 = vpack.c.b16 %v1453, %v1449
    %v2002 = vpack.c.b16 %v1454, %v1450
    %v2003 = vpack.c.b16 %v1455, %v1451
    %v2004 = vpack.c.b16 %v1460, %v1456
    %v2005 = vpack.c.b16 %v1461, %v1457
    %v2006 = vpack.c.b16 %v1462, %v1458
    %v2007 = vpack.c.b16 %v1463, %v1459
    %v2008 = vpack.c.b16 %v1468, %v1464
    %v2009 = vpack.c.b16 %v1469, %v1465
    %v2010 = vpack.c.b16 %v1470, %v1466
    %v2011 = vpack.c.b16 %v1471, %v1467
    %v2012 = vpack.c.b16 %v1476, %v1472
    %v2013 = vpack.c.b16 %v1477, %v1473
    %v2014 = vpack.c.b16 %v1478, %v1474
    %v2015 = vpack.c.b16 %v1479, %v1475
    %v2016 = vpack.c.b16 %v1484, %v1480
    %v2017 = vpack.c.b16 %v1485, %v1481
    %v2018 = vpack.c.b16 %v1486, %v1482
    %v2019 = vpack.c.b16 %v1487, %v1483
    %v2020 = vpack.c.b16 %v1492, %v1488
    %v2021 = vpack.c.b16 %v1493, %v1489
    %v2022 = vpack.c.b16 %v1494, %v1490
    %v2023 = vpack.c.b16 %v1495, %v1491
    %v2024 = vpack.c.b16 %v1500, %v1496
    %v2025 = vpack.c.b16 %v1501, %v1497
    %v2026 = vpack.c.b16 %v1502, %v1498
    %v2027 = vpack.c.b16 %v1503, %v1499
    %v2028 = vpack.c.b16 %v1508, %v1504
    %v2029 = vpack.c.b16 %v1509, %v1505
    %v2030 = vpack.c.b16 %v1510, %v1506
    %v2031 = vpack.c.b16 %v1511, %v1507
    %v2032 = vpack.c.b16 %v1516, %v1512
    %v2033 = vpack.c.b16 %v1517, %v1513
    %v2034 = vpack.c.b16 %v1518, %v1514
    %v2035 = vpack.c.b16 %v1519, %v1515
    %v2036 = vpack.c.b16 %v1524, %v1520
    %v2037 = vpack.c.b16 %v1525, %v1521
    %v2038 = vpack.c.b16 %v1526, %v1522
    %v2039 = vpack.c.b16 %v1527, %v1523
    %v2040 = vpack.c.b16 %v1532, %v1528
    %v2041 = vpack.c.b16 %v1533, %v1529
    %v2042 = vpack.c.b16 %v1534, %v1530
    %v2043 = vpack.c.b16 %v1535, %v1531
    %v2044 = vpack.c.b16 %v1540, %v1536
    %v2045 = vpack.c.b16 %v1541, %v1537
    %v2046 = vpack.c.b16 %v1542, %v1538
    %v2047 = vpack.c.b16 %v1543, %v1539
    %v2048 = vpack.c.b16 %v1548, %v1544
    %v2049 = vpack.c.b16 %v1549, %v1545
    %v2050 = vpack.c.b16 %v1550, %v1546
    %v2051 = vpack.c.b16 %v1551, %v1547
    %v2052 = vpack.c.b16 %v1556, %v1552
    %v2053 = vpack.c.b16 %v1557, %v1553
    %v2054 = vpack.c.b16 %v1558, %v1554
    %v2055 = vpack.c.b16 %v1559, %v1555
    %v2056 = vpack.c.b16 %v1564, %v1560
    %v2057 = vpack.c.b16 %v1565, %v1561
    %v2058 = vpack.c.b16 %v1566, %v1562
    %v2059 = vpack.c.b16 %v1567, %v1563
    %v2060 = vpack.c.b16 %v1572, %v1568
    %v2061 = vpack.c.b16 %v1573, %v1569
    %v2062 = vpack.c.b16 %v1574, %v1570
    %v2063 = vpack.c.b16 %v1575, %v1571
    %v2064 = vpack.c.b16 %v1580, %v1576
    %v2065 = vpack.c.b16 %v1581, %v1577
    %v2066 = vpack.c.b16 %v1582, %v1578
    %v2067 = vpack.c.b16 %v1583, %v1579
    %v2068 = vpack.c.b16 %v1588, %v1584
    %v2069 = vpack.c.b16 %v1589, %v1585
    %v2070 = vpack.c.b16 %v1590, %v1586
    %v2071 = vpack.c.b16 %v1591, %v1587
    %v2072 = vpack.c.b16 %v1596, %v1592
    %v2073 = vpack.c.b16 %v1597, %v1593
    %v2074 = vpack.c.b16 %v1598, %v1594
    %v2075 = vpack.c.b16 %v1599, %v1595
    %v2076 = vpack.c.b16 %v1604, %v1600
    %v2077 = vpack.c.b16 %v1605, %v1601
    %v2078 = vpack.c.b16 %v1606, %v1602
    %v2079 = vpack.c.b16 %v1607, %v1603
    %v2080 = vpack.c.b16 %v1612, %v1608
    %v2081 = vpack.c.b16 %v1613, %v1609
    %v2082 = vpack.c.b16 %v1614, %v1610
    %v2083 = vpack.c.b16 %v1615, %v1611
    %v2084 = vpack.c.b16 %v1620, %v1616
    %v2085 = vpack.c.b16 %v1621, %v1617
    %v2086 = vpack.c.b16 %v1622, %v1618
    %v2087 = vpack.c.b16 %v1623, %v1619
    %v2088 = vpack.c.b16 %v1628, %v1624
    %v2089 = vpack.c.b16 %v1629, %v1625
    %v2090 = vpack.c.b16 %v1630, %v1626
    %v2091 = vpack.c.b16 %v1631, %v1627
    %v2092 = vpack.c.b16 %v1636, %v1632
    %v2093 = vpack.c.b16 %v1637, %v1633
    %v2094 = vpack.c.b16 %v1638, %v1634
    %v2095 = vpack.c.b16 %v1639, %v1635
    %v2096 = vpack.c.b16 %v1644, %v1640
    %v2097 = vpack.c.b16 %v1645, %v1641
    %v2098 = vpack.c.b16 %v1646, %v1642
    %v2099 = vpack.c.b16 %v1647, %v1643
    %v2100 = vpack.c.b16 %v1652, %v1648
    %v2101 = vpack.c.b16 %v1653, %v1649
    %v2102 = vpack.c.b16 %v1654, %v1650
    %v2103 = vpack.c.b16 %v1655, %v1651
    %v2104 = vpack.c.b16 %v1660, %v1656
    %v2105 = vpack.c.b16 %v1661, %v1657
    %v2106 = vpack.c.b16 %v1662, %v1658
    %v2107 = vpack.c.b16 %v1663, %v1659
    %v2108 = vpack.c.b16 %v1668, %v1664
    %v2109 = vpack.c.b16 %v1669, %v1665
    %v2110 = vpack.c.b16 %v1670, %v1666
    %v2111 = vpack.c.b16 %v1671, %v1667
    %v2112 = vpack.c.b16 %v1676, %v1672
    %v2113 = vpack.c.b16 %v1677, %v1673
    %v2114 = vpack.c.b16 %v1678, %v1674
    %v2115 = vpack.c.b16 %v1679, %v1675
    %v2116 = vpack.c.b16 %v1684, %v1680
    %v2117 = vpack.c.b16 %v1685, %v1681
    %v2118 = vpack.c.b16 %v1686, %v1682
    %v2119 = vpack.c.b16 %v1687, %v1683
    %v2120 = vpack.c.b16 %v1692, %v1688
    %v2121 = vpack.c.b16 %v1693, %v1689
    %v2122 = vpack.c.b16 %v1694, %v1690
    %v2123 = vpack.c.b16 %v1695, %v1691
    %v2124 = vpack.c.b16 %v1700, %v1696
    %v2125 = vpack.c.b16 %v1701, %v1697
    %v2126 = vpack.c.b16 %v1702, %v1698
    %v2127 = vpack.c.b16 %v1703, %v1699
    %v2128 = vpack.c.b16 %v1708, %v1704
    %v2129 = vpack.c.b16 %v1709, %v1705
    %v2130 = vpack.c.b16 %v1710, %v1706
    %v2131 = vpack.c.b16 %v1711, %v1707
    %v2132 = vpack.c.b16 %v1716, %v1712
    %v2133 = vpack.c.b16 %v1717, %v1713
    %v2134 = vpack.c.b16 %v1718, %v1714
    %v2135 = vpack.c.b16 %v1719, %v1715
    %v2136 = vpack.c.b16 %v1724, %v1720
    %v2137 = vpack.c.b16 %v1725, %v1721
    %v2138 = vpack.c.b16 %v1726, %v1722
    %v2139 = vpack.c.b16 %v1727, %v1723
    %v2140 = vpack.c.b16 %v1732, %v1728
    %v2141 = vpack.c.b16 %v1733, %v1729
    %v2142 = vpack.c.b16 %v1734, %v1730
    %v2143 = vpack.c.b16 %v1735, %v1731
    %v2144 = vpack.c.b16 %v1740, %v1736
    %v2145 = vpack.c.b16 %v1741, %v1737
    %v2146 = vpack.c.b16 %v1742, %v1738
    %v2147 = vpack.c.b16 %v1743, %v1739
    %v2148 = vpack.c.b16 %v1748, %v1744
    %v2149 = vpack.c.b16 %v1749, %v1745
    %v2150 = vpack.c.b16 %v1750, %v1746
    %v2151 = vpack.c.b16 %v1751, %v1747
    %vm2552 = vcmask 523264
    %v2554 = vsel %vm2552, %v129, 0
    %2556 = vmatprep.subr.bf16.mxu0 %v1753
    %2557 = vmatpush1.bf16.msra.mxu0 %v1752
    %2558 = vmatprep.subr.bf16.mxu0 %v1757
    %2559 = vmatpush1.bf16.msra.mxu0 %v1756
    %2560 = vmatprep.subr.bf16.mxu0 %v1761
    %2561 = vmatpush1.bf16.msra.mxu0 %v1760
    %2562 = vmatprep.subr.bf16.mxu0 %v1765
    %2563 = vmatpush1.bf16.msra.mxu0 %v1764
    %2564 = vmatprep.subr.bf16.mxu0 %v1769
    %2565 = vmatpush1.bf16.msra.mxu0 %v1768
    %2566 = vmatprep.subr.bf16.mxu0 %v1773
    %2567 = vmatpush1.bf16.msra.mxu0 %v1772
    %2568 = vmatprep.subr.bf16.mxu0 %v1777
    %2569 = vmatpush1.bf16.msra.mxu0 %v1776
    %2570 = vmatprep.subr.bf16.mxu0 %v1781
    %2571 = vmatpush1.bf16.msra.mxu0 %v1780
    %2572 = vmatprep.subr.bf16.mxu0 %v1785
    %2573 = vmatpush1.bf16.msra.mxu0 %v1784
    %2574 = vmatprep.subr.bf16.mxu0 %v1789
    %2575 = vmatpush1.bf16.msra.mxu0 %v1788
    %2576 = vmatprep.subr.bf16.mxu0 %v1793
    %2577 = vmatpush1.bf16.msra.mxu0 %v1792
    %2578 = vmatprep.subr.bf16.mxu0 %v1797
    %2579 = vmatpush1.bf16.msra.mxu0 %v1796
    %2580 = vmatprep.subr.bf16.mxu0 %v1801
    %2581 = vmatpush1.bf16.msra.mxu0 %v1800
    %2582 = vmatprep.subr.bf16.mxu0 %v1805
    %2583 = vmatpush1.bf16.msra.mxu0 %v1804
    %2584 = vmatprep.subr.bf16.mxu0 %v1809
    %2585 = vmatpush1.bf16.msra.mxu0 %v1808
    %2586 = vmatprep.subr.bf16.mxu0 %v1813
    %2587 = vmatpush1.bf16.msra.mxu0 %v1812
    %2588 = vmatprep.mubr.bf16.mxu0 %v118
    %2589 = vmatmul.mubr.bf16.gmra.mrb[0].mxu0 %v117
    %v2590 = vpop.f32.mrb[0].mxu0
    %v2591 = vadd.f32 %v535, %v2590
    %v2592 = vpop.f32.mrb[0].mxu0
    %v2593 = vadd.f32 %v539, %v2592
    %v2594 = vpop.f32.mrb[0].mxu0
    %v2595 = vpop.f32.mrb[0].mxu0
    %2596 = vdwg.mxu0
    %2597 = vmatprep.subr.bf16.mxu0 %v1817
    %2598 = vmatpush1.bf16.msra.mxu0 %v1816
    %2599 = vmatprep.subr.bf16.mxu0 %v1821
    %2600 = vmatpush1.bf16.msra.mxu0 %v1820
    %2601 = vmatprep.subr.bf16.mxu0 %v1825
    %2602 = vmatpush1.bf16.msra.mxu0 %v1824
    %2603 = vmatprep.subr.bf16.mxu0 %v1829
    %2604 = vmatpush1.bf16.msra.mxu0 %v1828
    %2605 = vmatprep.subr.bf16.mxu0 %v1833
    %2606 = vmatpush1.bf16.msra.mxu0 %v1832
    %2607 = vmatprep.subr.bf16.mxu0 %v1837
    %2608 = vmatpush1.bf16.msra.mxu0 %v1836
    %2609 = vmatprep.subr.bf16.mxu0 %v1841
    %2610 = vmatpush1.bf16.msra.mxu0 %v1840
    %2611 = vmatprep.subr.bf16.mxu0 %v1845
    %2612 = vmatpush1.bf16.msra.mxu0 %v1844
    %2613 = vmatprep.subr.bf16.mxu0 %v1849
    %2614 = vmatpush1.bf16.msra.mxu0 %v1848
    %2615 = vmatprep.subr.bf16.mxu0 %v1853
    %2616 = vmatpush1.bf16.msra.mxu0 %v1852
    %2617 = vmatprep.subr.bf16.mxu0 %v1857
    %2618 = vmatpush1.bf16.msra.mxu0 %v1856
    %2619 = vmatprep.subr.bf16.mxu0 %v1861
    %2620 = vmatpush1.bf16.msra.mxu0 %v1860
    %2621 = vmatprep.subr.bf16.mxu0 %v1865
    %2622 = vmatpush1.bf16.msra.mxu0 %v1864
    %2623 = vmatprep.subr.bf16.mxu0 %v1869
    %2624 = vmatpush1.bf16.msra.mxu0 %v1868
    %2625 = vmatprep.subr.bf16.mxu0 %v1873
    %2626 = vmatpush1.bf16.msra.mxu0 %v1872
    %2627 = vmatprep.subr.bf16.mxu0 %v1877
    %2628 = vmatpush1.bf16.msra.mxu0 %v1876
    %2629 = vmatprep.mubr.bf16.mxu0 %v120
    %2630 = vmatmul.mubr.bf16.gmra.mrb[0].mxu0 %v119
    %v2631 = vpop.f32.mrb[0].mxu0
    %v2632 = vadd.f32 %v2591, %v2631
    %v2633 = vpop.f32.mrb[0].mxu0
    %v2634 = vadd.f32 %v2593, %v2633
    %v2635 = vpop.f32.mrb[0].mxu0
    %v2636 = vpop.f32.mrb[0].mxu0
    %2637 = vdwg.mxu0
    %2638 = vmatprep.subr.bf16.mxu0 %v1881
    %2639 = vmatpush1.bf16.msra.mxu0 %v1880
    %2640 = vmatprep.subr.bf16.mxu0 %v1885
    %2641 = vmatpush1.bf16.msra.mxu0 %v1884
    %2642 = vmatprep.subr.bf16.mxu0 %v1889
    %2643 = vmatpush1.bf16.msra.mxu0 %v1888
    %2644 = vmatprep.subr.bf16.mxu0 %v1893
    %2645 = vmatpush1.bf16.msra.mxu0 %v1892
    %2646 = vmatprep.subr.bf16.mxu0 %v1897
    %2647 = vmatpush1.bf16.msra.mxu0 %v1896
    %2648 = vmatprep.subr.bf16.mxu0 %v1901
    %2649 = vmatpush1.bf16.msra.mxu0 %v1900
    %2650 = vmatprep.subr.bf16.mxu0 %v1905
    %2651 = vmatpush1.bf16.msra.mxu0 %v1904
    %2652 = vmatprep.subr.bf16.mxu0 %v1909
    %2653 = vmatpush1.bf16.msra.mxu0 %v1908
    %2654 = vmatprep.subr.bf16.mxu0 %v1913
    %2655 = vmatpush1.bf16.msra.mxu0 %v1912
    %2656 = vmatprep.subr.bf16.mxu0 %v1917
    %2657 = vmatpush1.bf16.msra.mxu0 %v1916
    %2658 = vmatprep.subr.bf16.mxu0 %v1921
    %2659 = vmatpush1.bf16.msra.mxu0 %v1920
    %2660 = vmatprep.subr.bf16.mxu0 %v1925
    %2661 = vmatpush1.bf16.msra.mxu0 %v1924
    %2662 = vmatprep.subr.bf16.mxu0 %v1929
    %2663 = vmatpush1.bf16.msra.mxu0 %v1928
    %2664 = vmatprep.subr.bf16.mxu0 %v1933
    %2665 = vmatpush1.bf16.msra.mxu0 %v1932
    %2666 = vmatprep.subr.bf16.mxu0 %v1937
    %2667 = vmatpush1.bf16.msra.mxu0 %v1936
    %2668 = vmatprep.subr.bf16.mxu0 %v1941
    %2669 = vmatpush1.bf16.msra.mxu0 %v1940
    %2670 = vmatprep.mubr.bf16.mxu0 %v122
    %2671 = vmatmul.mubr.bf16.gmra.mrb[0].mxu0 %v121
    %v2672 = vpop.f32.mrb[0].mxu0
    %v2673 = vadd.f32 %v2632, %v2672
    %v2674 = vpop.f32.mrb[0].mxu0
    %v2675 = vadd.f32 %v2634, %v2674
    %v2676 = vpop.f32.mrb[0].mxu0
    %v2677 = vpop.f32.mrb[0].mxu0
    %2678 = vdwg.mxu0
    %2679 = vmatprep.subr.bf16.mxu0 %v1945
    %2680 = vmatpush1.bf16.msra.mxu0 %v1944
    %2681 = vmatprep.subr.bf16.mxu0 %v1949
    %2682 = vmatpush1.bf16.msra.mxu0 %v1948
    %2683 = vmatprep.subr.bf16.mxu0 %v1953
    %2684 = vmatpush1.bf16.msra.mxu0 %v1952
    %2685 = vmatprep.subr.bf16.mxu0 %v1957
    %2686 = vmatpush1.bf16.msra.mxu0 %v1956
    %2687 = vmatprep.subr.bf16.mxu0 %v1961
    %2688 = vmatpush1.bf16.msra.mxu0 %v1960
    %2689 = vmatprep.subr.bf16.mxu0 %v1965
    %2690 = vmatpush1.bf16.msra.mxu0 %v1964
    %2691 = vmatprep.subr.bf16.mxu0 %v1969
    %2692 = vmatpush1.bf16.msra.mxu0 %v1968
    %2693 = vmatprep.subr.bf16.mxu0 %v1973
    %2694 = vmatpush1.bf16.msra.mxu0 %v1972
    %2695 = vmatprep.subr.bf16.mxu0 %v1977
    %2696 = vmatpush1.bf16.msra.mxu0 %v1976
    %2697 = vmatprep.subr.bf16.mxu0 %v1981
    %2698 = vmatpush1.bf16.msra.mxu0 %v1980
    %2699 = vmatprep.subr.bf16.mxu0 %v1985
    %2700 = vmatpush1.bf16.msra.mxu0 %v1984
    %2701 = vmatprep.subr.bf16.mxu0 %v1989
    %2702 = vmatpush1.bf16.msra.mxu0 %v1988
    %2703 = vmatprep.subr.bf16.mxu0 %v1993
    %2704 = vmatpush1.bf16.msra.mxu0 %v1992
    %2705 = vmatprep.subr.bf16.mxu0 %v1997
    %2706 = vmatpush1.bf16.msra.mxu0 %v1996
    %2707 = vmatprep.subr.bf16.mxu0 %v2001
    %2708 = vmatpush1.bf16.msra.mxu0 %v2000
    %2709 = vmatprep.subr.bf16.mxu0 %v2005
    %2710 = vmatpush1.bf16.msra.mxu0 %v2004
    %2711 = vmatprep.mubr.bf16.mxu0 %v124
    %2712 = vmatmul.mubr.bf16.gmra.mrb[0].mxu0 %v123
    %v2713 = vpop.f32.mrb[0].mxu0
    %v2714 = vadd.f32 %v2673, %v2713
    %v2715 = vpop.f32.mrb[0].mxu0
    %v2716 = vadd.f32 %v2675, %v2715
    %v2717 = vpop.f32.mrb[0].mxu0
    %v2718 = vpop.f32.mrb[0].mxu0
    %2719 = vdwg.mxu0
    %2720 = vmatprep.subr.bf16.mxu0 %v2009
    %2721 = vmatpush1.bf16.msra.mxu0 %v2008
    %2722 = vmatprep.subr.bf16.mxu0 %v2013
    %2723 = vmatpush1.bf16.msra.mxu0 %v2012
    %2724 = vmatprep.subr.bf16.mxu0 %v2017
    %2725 = vmatpush1.bf16.msra.mxu0 %v2016
    %2726 = vmatprep.subr.bf16.mxu0 %v2021
    %2727 = vmatpush1.bf16.msra.mxu0 %v2020
    %2728 = vmatprep.subr.bf16.mxu0 %v2025
    %2729 = vmatpush1.bf16.msra.mxu0 %v2024
    %2730 = vmatprep.subr.bf16.mxu0 %v2029
    %2731 = vmatpush1.bf16.msra.mxu0 %v2028
    %2732 = vmatprep.subr.bf16.mxu0 %v2033
    %2733 = vmatpush1.bf16.msra.mxu0 %v2032
    %2734 = vmatprep.subr.bf16.mxu0 %v2037
    %2735 = vmatpush1.bf16.msra.mxu0 %v2036
    %2736 = vmatprep.subr.bf16.mxu0 %v2041
    %2737 = vmatpush1.bf16.msra.mxu0 %v2040
    %2738 = vmatprep.subr.bf16.mxu0 %v2045
    %2739 = vmatpush1.bf16.msra.mxu0 %v2044
    %2740 = vmatprep.subr.bf16.mxu0 %v2049
    %2741 = vmatpush1.bf16.msra.mxu0 %v2048
    %2742 = vmatprep.subr.bf16.mxu0 %v2053
    %2743 = vmatpush1.bf16.msra.mxu0 %v2052
    %2744 = vmatprep.subr.bf16.mxu0 %v2057
    %2745 = vmatpush1.bf16.msra.mxu0 %v2056
    %2746 = vmatprep.subr.bf16.mxu0 %v2061
    %2747 = vmatpush1.bf16.msra.mxu0 %v2060
    %2748 = vmatprep.subr.bf16.mxu0 %v2065
    %2749 = vmatpush1.bf16.msra.mxu0 %v2064
    %2750 = vmatprep.subr.bf16.mxu0 %v2069
    %2751 = vmatpush1.bf16.msra.mxu0 %v2068
    %2752 = vmatprep.mubr.bf16.mxu0 %v126
    %2753 = vmatmul.mubr.bf16.gmra.mrb[0].mxu0 %v125
    %v2754 = vpop.f32.mrb[0].mxu0
    %v2755 = vadd.f32 %v2714, %v2754
    %v2756 = vpop.f32.mrb[0].mxu0
    %v2757 = vadd.f32 %v2716, %v2756
    %v2758 = vpop.f32.mrb[0].mxu0
    %v2759 = vpop.f32.mrb[0].mxu0
    %2760 = vdwg.mxu0
    %2761 = vmatprep.subr.bf16.mxu0 %v2073
    %2762 = vmatpush1.bf16.msra.mxu0 %v2072
    %2763 = vmatprep.subr.bf16.mxu0 %v2077
    %2764 = vmatpush1.bf16.msra.mxu0 %v2076
    %2765 = vmatprep.subr.bf16.mxu0 %v2081
    %2766 = vmatpush1.bf16.msra.mxu0 %v2080
    %2767 = vmatprep.subr.bf16.mxu0 %v2085
    %2768 = vmatpush1.bf16.msra.mxu0 %v2084
    %2769 = vmatprep.subr.bf16.mxu0 %v2089
    %2770 = vmatpush1.bf16.msra.mxu0 %v2088
    %2771 = vmatprep.subr.bf16.mxu0 %v2093
    %2772 = vmatpush1.bf16.msra.mxu0 %v2092
    %2773 = vmatprep.subr.bf16.mxu0 %v2097
    %2774 = vmatpush1.bf16.msra.mxu0 %v2096
    %2775 = vmatprep.subr.bf16.mxu0 %v2101
    %2776 = vmatpush1.bf16.msra.mxu0 %v2100
    %2777 = vmatprep.subr.bf16.mxu0 %v2105
    %2778 = vmatpush1.bf16.msra.mxu0 %v2104
    %2779 = vmatprep.subr.bf16.mxu0 %v2109
    %2780 = vmatpush1.bf16.msra.mxu0 %v2108
    %2781 = vmatprep.subr.bf16.mxu0 %v2113
    %2782 = vmatpush1.bf16.msra.mxu0 %v2112
    %2783 = vmatprep.subr.bf16.mxu0 %v2117
    %2784 = vmatpush1.bf16.msra.mxu0 %v2116
    %2785 = vmatprep.subr.bf16.mxu0 %v2121
    %2786 = vmatpush1.bf16.msra.mxu0 %v2120
    %2787 = vmatprep.subr.bf16.mxu0 %v2125
    %2788 = vmatpush1.bf16.msra.mxu0 %v2124
    %2789 = vmatprep.subr.bf16.mxu0 %v2129
    %2790 = vmatpush1.bf16.msra.mxu0 %v2128
    %2791 = vmatprep.subr.bf16.mxu0 %v2133
    %2792 = vmatpush1.bf16.msra.mxu0 %v2132
    %2793 = vmatprep.mubr.bf16.mxu0 %v128
    %2794 = vmatmul.mubr.bf16.gmra.mrb[0].mxu0 %v127
    %v2795 = vpop.f32.mrb[0].mxu0
    %v2796 = vadd.f32 %v2755, %v2795
    %v2797 = vpop.f32.mrb[0].mxu0
    %v2798 = vadd.f32 %v2757, %v2797
    %v2799 = vpop.f32.mrb[0].mxu0
    %v2800 = vpop.f32.mrb[0].mxu0
    %2801 = vdwg.mxu0
    %2802 = vmatprep.subr.bf16.mxu0 %v2137
    %2803 = vmatpush1.bf16.msra.mxu0 %v2136
    %2804 = vmatprep.subr.bf16.mxu0 %v2141
    %2805 = vmatpush1.bf16.msra.mxu0 %v2140
    %2806 = vmatprep.subr.bf16.mxu0 %v2145
    %2807 = vmatpush1.bf16.msra.mxu0 %v2144
    %2808 = vmatprep.subr.bf16.mxu0 %v2149
    %2809 = vmatpush1.bf16.msra.mxu0 %v2148
    %2810 = vmatprep.subr.bf16.mxu0 0
    %2811 = vmatpush1.bf16.msra.mxu0 0
    %2812 = vmatprep.subr.bf16.mxu0 0
    %2813 = vmatpush1.bf16.msra.mxu0 0
    %2814 = vmatprep.subr.bf16.mxu0 0
    %2815 = vmatpush1.bf16.msra.mxu0 0
    %2816 = vmatprep.subr.bf16.mxu0 0
    %2817 = vmatpush1.bf16.msra.mxu0 0
    %2818 = vmatprep.subr.bf16.mxu0 0
    %2819 = vmatpush1.bf16.msra.mxu0 0
    %2820 = vmatprep.subr.bf16.mxu0 0
    %2821 = vmatpush1.bf16.msra.mxu0 0
    %2822 = vmatprep.subr.bf16.mxu0 0
    %2823 = vmatpush1.bf16.msra.mxu0 0
    %2824 = vmatprep.subr.bf16.mxu0 0
    %2825 = vmatpush1.bf16.msra.mxu0 0
    %2826 = vmatprep.subr.bf16.mxu0 0
    %2827 = vmatpush1.bf16.msra.mxu0 0
    %2828 = vmatprep.subr.bf16.mxu0 0
    %2829 = vmatpush1.bf16.msra.mxu0 0
    %2830 = vmatprep.subr.bf16.mxu0 0
    %2831 = vmatpush1.bf16.msra.mxu0 0
    %2832 = vmatprep.subr.bf16.mxu0 0
    %2833 = vmatpush1.bf16.msra.mxu0 0
    %2834 = vmatprep.mubr.bf16.mxu0 0
    %2835 = vmatmul.mubr.bf16.gmra.mrb[0].mxu0 %v2554
    %v2836 = vpop.f32.mrb[0].mxu0
    %v2837 = vadd.f32 %v2796, %v2836
    %v2838 = vpop.f32.mrb[0].mxu0
    %v2839 = vadd.f32 %v2798, %v2838
    %v2840 = vpop.f32.mrb[0].mxu0
    %v2841 = vpop.f32.mrb[0].mxu0
    %2842 = vdwg.mxu0
    %2843 = vmatprep.subr.bf16.mxu0 %v1755
    %2844 = vmatpush1.bf16.msra.mxu0 %v1754
    %2845 = vmatprep.subr.bf16.mxu0 %v1759
    %2846 = vmatpush1.bf16.msra.mxu0 %v1758
    %2847 = vmatprep.subr.bf16.mxu0 %v1763
    %2848 = vmatpush1.bf16.msra.mxu0 %v1762
    %2849 = vmatprep.subr.bf16.mxu0 %v1767
    %2850 = vmatpush1.bf16.msra.mxu0 %v1766
    %2851 = vmatprep.subr.bf16.mxu0 %v1771
    %2852 = vmatpush1.bf16.msra.mxu0 %v1770
    %2853 = vmatprep.subr.bf16.mxu0 %v1775
    %2854 = vmatpush1.bf16.msra.mxu0 %v1774
    %2855 = vmatprep.subr.bf16.mxu0 %v1779
    %2856 = vmatpush1.bf16.msra.mxu0 %v1778
    %2857 = vmatprep.subr.bf16.mxu0 %v1783
    %2858 = vmatpush1.bf16.msra.mxu0 %v1782
    %2859 = vmatprep.subr.bf16.mxu0 %v1787
    %2860 = vmatpush1.bf16.msra.mxu0 %v1786
    %2861 = vmatprep.subr.bf16.mxu0 %v1791
    %2862 = vmatpush1.bf16.msra.mxu0 %v1790
    %2863 = vmatprep.subr.bf16.mxu0 %v1795
    %2864 = vmatpush1.bf16.msra.mxu0 %v1794
    %2865 = vmatprep.subr.bf16.mxu0 %v1799
    %2866 = vmatpush1.bf16.msra.mxu0 %v1798
    %2867 = vmatprep.subr.bf16.mxu0 %v1803
    %2868 = vmatpush1.bf16.msra.mxu0 %v1802
    %2869 = vmatprep.subr.bf16.mxu0 %v1807
    %2870 = vmatpush1.bf16.msra.mxu0 %v1806
    %2871 = vmatprep.subr.bf16.mxu0 %v1811
    %2872 = vmatpush1.bf16.msra.mxu0 %v1810
    %2873 = vmatprep.subr.bf16.mxu0 %v1815
    %2874 = vmatpush1.bf16.msra.mxu0 %v1814
    %2875 = vmatprep.mubr.bf16.mxu0 %v118
    %2876 = vmatmul.mubr.bf16.gmra.mrb[0].mxu0 %v117
    %v2877 = vpop.f32.mrb[0].mxu0
    %v2878 = vadd.f32 %v543, %v2877
    %v2879 = vpop.f32.mrb[0].mxu0
    %v2880 = vadd.f32 %v547, %v2879
    %v2881 = vpop.f32.mrb[0].mxu0
    %v2882 = vpop.f32.mrb[0].mxu0
    %2883 = vdwg.mxu0
    %2884 = vmatprep.subr.bf16.mxu0 %v1819
    %2885 = vmatpush1.bf16.msra.mxu0 %v1818
    %2886 = vmatprep.subr.bf16.mxu0 %v1823
    %2887 = vmatpush1.bf16.msra.mxu0 %v1822
    %2888 = vmatprep.subr.bf16.mxu0 %v1827
    %2889 = vmatpush1.bf16.msra.mxu0 %v1826
    %2890 = vmatprep.subr.bf16.mxu0 %v1831
    %2891 = vmatpush1.bf16.msra.mxu0 %v1830
    %2892 = vmatprep.subr.bf16.mxu0 %v1835
    %2893 = vmatpush1.bf16.msra.mxu0 %v1834
    %2894 = vmatprep.subr.bf16.mxu0 %v1839
    %2895 = vmatpush1.bf16.msra.mxu0 %v1838
    %2896 = vmatprep.subr.bf16.mxu0 %v1843
    %2897 = vmatpush1.bf16.msra.mxu0 %v1842
    %2898 = vmatprep.subr.bf16.mxu0 %v1847
    %2899 = vmatpush1.bf16.msra.mxu0 %v1846
    %2900 = vmatprep.subr.bf16.mxu0 %v1851
    %2901 = vmatpush1.bf16.msra.mxu0 %v1850
    %2902 = vmatprep.subr.bf16.mxu0 %v1855
    %2903 = vmatpush1.bf16.msra.mxu0 %v1854
    %2904 = vmatprep.subr.bf16.mxu0 %v1859
    %2905 = vmatpush1.bf16.msra.mxu0 %v1858
    %2906 = vmatprep.subr.bf16.mxu0 %v1863
    %2907 = vmatpush1.bf16.msra.mxu0 %v1862
    %2908 = vmatprep.subr.bf16.mxu0 %v1867
    %2909 = vmatpush1.bf16.msra.mxu0 %v1866
    %2910 = vmatprep.subr.bf16.mxu0 %v1871
    %2911 = vmatpush1.bf16.msra.mxu0 %v1870
    %2912 = vmatprep.subr.bf16.mxu0 %v1875
    %2913 = vmatpush1.bf16.msra.mxu0 %v1874
    %2914 = vmatprep.subr.bf16.mxu0 %v1879
    %2915 = vmatpush1.bf16.msra.mxu0 %v1878
    %2916 = vmatprep.mubr.bf16.mxu0 %v120
    %2917 = vmatmul.mubr.bf16.gmra.mrb[0].mxu0 %v119
    %v2918 = vpop.f32.mrb[0].mxu0
    %v2919 = vadd.f32 %v2878, %v2918
    %v2920 = vpop.f32.mrb[0].mxu0
    %v2921 = vadd.f32 %v2880, %v2920
    %v2922 = vpop.f32.mrb[0].mxu0
    %v2923 = vpop.f32.mrb[0].mxu0
    %2924 = vdwg.mxu0
    %2925 = vmatprep.subr.bf16.mxu0 %v1883
    %2926 = vmatpush1.bf16.msra.mxu0 %v1882
    %2927 = vmatprep.subr.bf16.mxu0 %v1887
    %2928 = vmatpush1.bf16.msra.mxu0 %v1886
    %2929 = vmatprep.subr.bf16.mxu0 %v1891
    %2930 = vmatpush1.bf16.msra.mxu0 %v1890
    %2931 = vmatprep.subr.bf16.mxu0 %v1895
    %2932 = vmatpush1.bf16.msra.mxu0 %v1894
    %2933 = vmatprep.subr.bf16.mxu0 %v1899
    %2934 = vmatpush1.bf16.msra.mxu0 %v1898
    %2935 = vmatprep.subr.bf16.mxu0 %v1903
    %2936 = vmatpush1.bf16.msra.mxu0 %v1902
    %2937 = vmatprep.subr.bf16.mxu0 %v1907
    %2938 = vmatpush1.bf16.msra.mxu0 %v1906
    %2939 = vmatprep.subr.bf16.mxu0 %v1911
    %2940 = vmatpush1.bf16.msra.mxu0 %v1910
    %2941 = vmatprep.subr.bf16.mxu0 %v1915
    %2942 = vmatpush1.bf16.msra.mxu0 %v1914
    %2943 = vmatprep.subr.bf16.mxu0 %v1919
    %2944 = vmatpush1.bf16.msra.mxu0 %v1918
    %2945 = vmatprep.subr.bf16.mxu0 %v1923
    %2946 = vmatpush1.bf16.msra.mxu0 %v1922
    %2947 = vmatprep.subr.bf16.mxu0 %v1927
    %2948 = vmatpush1.bf16.msra.mxu0 %v1926
    %2949 = vmatprep.subr.bf16.mxu0 %v1931
    %2950 = vmatpush1.bf16.msra.mxu0 %v1930
    %2951 = vmatprep.subr.bf16.mxu0 %v1935
    %2952 = vmatpush1.bf16.msra.mxu0 %v1934
    %2953 = vmatprep.subr.bf16.mxu0 %v1939
    %2954 = vmatpush1.bf16.msra.mxu0 %v1938
    %2955 = vmatprep.subr.bf16.mxu0 %v1943
    %2956 = vmatpush1.bf16.msra.mxu0 %v1942
    %2957 = vmatprep.mubr.bf16.mxu0 %v122
    %2958 = vmatmul.mubr.bf16.gmra.mrb[0].mxu0 %v121
    %v2959 = vpop.f32.mrb[0].mxu0
    %v2960 = vadd.f32 %v2919, %v2959
    %v2961 = vpop.f32.mrb[0].mxu0
    %v2962 = vadd.f32 %v2921, %v2961
    %v2963 = vpop.f32.mrb[0].mxu0
    %v2964 = vpop.f32.mrb[0].mxu0
    %2965 = vdwg.mxu0
    %2966 = vmatprep.subr.bf16.mxu0 %v1947
    %2967 = vmatpush1.bf16.msra.mxu0 %v1946
    %2968 = vmatprep.subr.bf16.mxu0 %v1951
    %2969 = vmatpush1.bf16.msra.mxu0 %v1950
    %2970 = vmatprep.subr.bf16.mxu0 %v1955
    %2971 = vmatpush1.bf16.msra.mxu0 %v1954
    %2972 = vmatprep.subr.bf16.mxu0 %v1959
    %2973 = vmatpush1.bf16.msra.mxu0 %v1958
    %2974 = vmatprep.subr.bf16.mxu0 %v1963
    %2975 = vmatpush1.bf16.msra.mxu0 %v1962
    %2976 = vmatprep.subr.bf16.mxu0 %v1967
    %2977 = vmatpush1.bf16.msra.mxu0 %v1966
    %2978 = vmatprep.subr.bf16.mxu0 %v1971
    %2979 = vmatpush1.bf16.msra.mxu0 %v1970
    %2980 = vmatprep.subr.bf16.mxu0 %v1975
    %2981 = vmatpush1.bf16.msra.mxu0 %v1974
    %2982 = vmatprep.subr.bf16.mxu0 %v1979
    %2983 = vmatpush1.bf16.msra.mxu0 %v1978
    %2984 = vmatprep.subr.bf16.mxu0 %v1983
    %2985 = vmatpush1.bf16.msra.mxu0 %v1982
    %2986 = vmatprep.subr.bf16.mxu0 %v1987
    %2987 = vmatpush1.bf16.msra.mxu0 %v1986
    %2988 = vmatprep.subr.bf16.mxu0 %v1991
    %2989 = vmatpush1.bf16.msra.mxu0 %v1990
    %2990 = vmatprep.subr.bf16.mxu0 %v1995
    %2991 = vmatpush1.bf16.msra.mxu0 %v1994
    %2992 = vmatprep.subr.bf16.mxu0 %v1999
    %2993 = vmatpush1.bf16.msra.mxu0 %v1998
    %2994 = vmatprep.subr.bf16.mxu0 %v2003
    %2995 = vmatpush1.bf16.msra.mxu0 %v2002
    %2996 = vmatprep.subr.bf16.mxu0 %v2007
    %2997 = vmatpush1.bf16.msra.mxu0 %v2006
    %2998 = vmatprep.mubr.bf16.mxu0 %v124
    %2999 = vmatmul.mubr.bf16.gmra.mrb[0].mxu0 %v123
    %v3000 = vpop.f32.mrb[0].mxu0
    %v3001 = vadd.f32 %v2960, %v3000
    %v3002 = vpop.f32.mrb[0].mxu0
    %v3003 = vadd.f32 %v2962, %v3002
    %v3004 = vpop.f32.mrb[0].mxu0
    %v3005 = vpop.f32.mrb[0].mxu0
    %3006 = vdwg.mxu0
    %3007 = vmatprep.subr.bf16.mxu0 %v2011
    %3008 = vmatpush1.bf16.msra.mxu0 %v2010
    %3009 = vmatprep.subr.bf16.mxu0 %v2015
    %3010 = vmatpush1.bf16.msra.mxu0 %v2014
    %3011 = vmatprep.subr.bf16.mxu0 %v2019
    %3012 = vmatpush1.bf16.msra.mxu0 %v2018
    %3013 = vmatprep.subr.bf16.mxu0 %v2023
    %3014 = vmatpush1.bf16.msra.mxu0 %v2022
    %3015 = vmatprep.subr.bf16.mxu0 %v2027
    %3016 = vmatpush1.bf16.msra.mxu0 %v2026
    %3017 = vmatprep.subr.bf16.mxu0 %v2031
    %3018 = vmatpush1.bf16.msra.mxu0 %v2030
    %3019 = vmatprep.subr.bf16.mxu0 %v2035
    %3020 = vmatpush1.bf16.msra.mxu0 %v2034
    %3021 = vmatprep.subr.bf16.mxu0 %v2039
    %3022 = vmatpush1.bf16.msra.mxu0 %v2038
    %3023 = vmatprep.subr.bf16.mxu0 %v2043
    %3024 = vmatpush1.bf16.msra.mxu0 %v2042
    %3025 = vmatprep.subr.bf16.mxu0 %v2047
    %3026 = vmatpush1.bf16.msra.mxu0 %v2046
    %3027 = vmatprep.subr.bf16.mxu0 %v2051
    %3028 = vmatpush1.bf16.msra.mxu0 %v2050
    %3029 = vmatprep.subr.bf16.mxu0 %v2055
    %3030 = vmatpush1.bf16.msra.mxu0 %v2054
    %3031 = vmatprep.subr.bf16.mxu0 %v2059
    %3032 = vmatpush1.bf16.msra.mxu0 %v2058
    %3033 = vmatprep.subr.bf16.mxu0 %v2063
    %3034 = vmatpush1.bf16.msra.mxu0 %v2062
    %3035 = vmatprep.subr.bf16.mxu0 %v2067
    %3036 = vmatpush1.bf16.msra.mxu0 %v2066
    %3037 = vmatprep.subr.bf16.mxu0 %v2071
    %3038 = vmatpush1.bf16.msra.mxu0 %v2070
    %3039 = vmatprep.mubr.bf16.mxu0 %v126
    %3040 = vmatmul.mubr.bf16.gmra.mrb[0].mxu0 %v125
    %v3041 = vpop.f32.mrb[0].mxu0
    %v3042 = vadd.f32 %v3001, %v3041
    %v3043 = vpop.f32.mrb[0].mxu0
    %v3044 = vadd.f32 %v3003, %v3043
    %v3045 = vpop.f32.mrb[0].mxu0
    %v3046 = vpop.f32.mrb[0].mxu0
    %3047 = vdwg.mxu0
    %3048 = vmatprep.subr.bf16.mxu0 %v2075
    %3049 = vmatpush1.bf16.msra.mxu0 %v2074
    %3050 = vmatprep.subr.bf16.mxu0 %v2079
    %3051 = vmatpush1.bf16.msra.mxu0 %v2078
    %3052 = vmatprep.subr.bf16.mxu0 %v2083
    %3053 = vmatpush1.bf16.msra.mxu0 %v2082
    %3054 = vmatprep.subr.bf16.mxu0 %v2087
    %3055 = vmatpush1.bf16.msra.mxu0 %v2086
    %3056 = vmatprep.subr.bf16.mxu0 %v2091
    %3057 = vmatpush1.bf16.msra.mxu0 %v2090
    %3058 = vmatprep.subr.bf16.mxu0 %v2095
    %3059 = vmatpush1.bf16.msra.mxu0 %v2094
    %3060 = vmatprep.subr.bf16.mxu0 %v2099
    %3061 = vmatpush1.bf16.msra.mxu0 %v2098
    %3062 = vmatprep.subr.bf16.mxu0 %v2103
    %3063 = vmatpush1.bf16.msra.mxu0 %v2102
    %3064 = vmatprep.subr.bf16.mxu0 %v2107
    %3065 = vmatpush1.bf16.msra.mxu0 %v2106
    %3066 = vmatprep.subr.bf16.mxu0 %v2111
    %3067 = vmatpush1.bf16.msra.mxu0 %v2110
    %3068 = vmatprep.subr.bf16.mxu0 %v2115
    %3069 = vmatpush1.bf16.msra.mxu0 %v2114
    %3070 = vmatprep.subr.bf16.mxu0 %v2119
    %3071 = vmatpush1.bf16.msra.mxu0 %v2118
    %3072 = vmatprep.subr.bf16.mxu0 %v2123
    %3073 = vmatpush1.bf16.msra.mxu0 %v2122
    %3074 = vmatprep.subr.bf16.mxu0 %v2127
    %3075 = vmatpush1.bf16.msra.mxu0 %v2126
    %3076 = vmatprep.subr.bf16.mxu0 %v2131
    %3077 = vmatpush1.bf16.msra.mxu0 %v2130
    %3078 = vmatprep.subr.bf16.mxu0 %v2135
    %3079 = vmatpush1.bf16.msra.mxu0 %v2134
    %3080 = vmatprep.mubr.bf16.mxu0 %v128
    %3081 = vmatmul.mubr.bf16.gmra.mrb[0].mxu0 %v127
    %v3082 = vpop.f32.mrb[0].mxu0
    %v3083 = vadd.f32 %v3042, %v3082
    %v3084 = vpop.f32.mrb[0].mxu0
    %v3085 = vadd.f32 %v3044, %v3084
    %v3086 = vpop.f32.mrb[0].mxu0
    %v3087 = vpop.f32.mrb[0].mxu0
    %3088 = vdwg.mxu0
    %3089 = vmatprep.subr.bf16.mxu0 %v2139
    %3090 = vmatpush1.bf16.msra.mxu0 %v2138
    %3091 = vmatprep.subr.bf16.mxu0 %v2143
    %3092 = vmatpush1.bf16.msra.mxu0 %v2142
    %3093 = vmatprep.subr.bf16.mxu0 %v2147
    %3094 = vmatpush1.bf16.msra.mxu0 %v2146
    %3095 = vmatprep.subr.bf16.mxu0 %v2151
    %3096 = vmatpush1.bf16.msra.mxu0 %v2150
    %3097 = vmatprep.subr.bf16.mxu0 0
    %3098 = vmatpush1.bf16.msra.mxu0 0
    %3099 = vmatprep.subr.bf16.mxu0 0
    %3100 = vmatpush1.bf16.msra.mxu0 0
    %3101 = vmatprep.subr.bf16.mxu0 0
    %3102 = vmatpush1.bf16.msra.mxu0 0
    %3103 = vmatprep.subr.bf16.mxu0 0
    %3104 = vmatpush1.bf16.msra.mxu0 0
    %3105 = vmatprep.subr.bf16.mxu0 0
    %3106 = vmatpush1.bf16.msra.mxu0 0
    %3107 = vmatprep.subr.bf16.mxu0 0
    %3108 = vmatpush1.bf16.msra.mxu0 0
    %3109 = vmatprep.subr.bf16.mxu0 0
    %3110 = vmatpush1.bf16.msra.mxu0 0
    %3111 = vmatprep.subr.bf16.mxu0 0
    %3112 = vmatpush1.bf16.msra.mxu0 0
    %3113 = vmatprep.subr.bf16.mxu0 0
    %3114 = vmatpush1.bf16.msra.mxu0 0
    %3115 = vmatprep.subr.bf16.mxu0 0
    %3116 = vmatpush1.bf16.msra.mxu0 0
    %3117 = vmatprep.subr.bf16.mxu0 0
    %3118 = vmatpush1.bf16.msra.mxu0 0
    %3119 = vmatprep.subr.bf16.mxu0 0
    %3120 = vmatpush1.bf16.msra.mxu0 0
    %3121 = vmatprep.mubr.bf16.mxu0 0
    %3122 = vmatmul.mubr.bf16.gmra.mrb[0].mxu0 %v2554
    %v3123 = vpop.f32.mrb[0].mxu0
    %v3124 = vadd.f32 %v3083, %v3123
    %v3125 = vpop.f32.mrb[0].mxu0
    %v3126 = vadd.f32 %v3085, %v3125
    %v3127 = vpop.f32.mrb[0].mxu0
    %v3128 = vpop.f32.mrb[0].mxu0
    %3129 = vdwg.mxu0
    %v3130 = vmax.f32 %v2837, 0.0
    %v3131 = vmax.f32 %v2839, 0.0
    %v3132 = vmax.f32 %v3124, 0.0
    %v3133 = vmax.f32 %v3126, 0.0
    %v3134 = vpack.c.bf16 %v3130, %v3130
    %v3135 = vpack.c.bf16 %v3131, %v3131
    %v3136 = vpack.c.bf16 %v3132, %v3132
    %v3137 = vpack.c.bf16 %v3133, %v3133
    %v3138 = vld [vmem:[#allocation7] sm:$0xf]
    %v3139 = vld [vmem:[#allocation7 + $0x4] sm:$0xf]
    %v3140 = vld [vmem:[#allocation7 + $0x8] sm:$0xf]
    %v3141 = vld [vmem:[#allocation7 + $0xc] sm:$0xf]
    %v3142 = vld [vmem:[#allocation7 + $0x10] sm:$0xf]
    %v3143 = vld [vmem:[#allocation7 + $0x14] sm:$0xf]
    %v3144 = vld [vmem:[#allocation7 + $0x18] sm:$0xf]
    %v3145 = vld [vmem:[#allocation7 + $0x1c] sm:$0xf]
    %v3146 = vld [vmem:[#allocation7 + $0x20] sm:$0xf]
    %v3147 = vld [vmem:[#allocation7 + $0x24] sm:$0xf]
    %v3148 = vld [vmem:[#allocation7 + $0x28] sm:$0xf]
    %v3149 = vld [vmem:[#allocation7 + $0x2c] sm:$0xf]
    %v3150 = vld [vmem:[#allocation7 + $0x30] sm:$0xf]
    %v3151 = vld [vmem:[#allocation7 + $0x34] sm:$0xf]
    %v3152 = vld [vmem:[#allocation7 + $0x38] sm:$0xf]
    %v3153 = vld [vmem:[#allocation7 + $0x3c] sm:$0xf]
    %v3154 = vld [vmem:[#allocation7 + $0x40] sm:$0xf]
    %v3155 = vld [vmem:[#allocation7 + $0x44] sm:$0xf]
    %v3156 = vld [vmem:[#allocation7 + $0x48] sm:$0xf]
    %v3157 = vld [vmem:[#allocation7 + $0x4c] sm:$0xf]
    %v3158 = vld [vmem:[#allocation7 + $0x50] sm:$0xf]
    %v3159 = vld [vmem:[#allocation7 + $0x54] sm:$0xf]
    %v3160 = vld [vmem:[#allocation7 + $0x58] sm:$0xf]
    %v3161 = vld [vmem:[#allocation7 + $0x5c] sm:$0xf]
    %v3162 = vld [vmem:[#allocation7 + $0x60] sm:$0xf]
    %v3163 = vld [vmem:[#allocation7 + $0x64] sm:$0xf]
    %v3164 = vld [vmem:[#allocation7 + $0x68] sm:$0xf]
    %v3165 = vld [vmem:[#allocation7 + $0x6c] sm:$0xf]
    %v3166 = vld [vmem:[#allocation7 + $0x70] sm:$0xf]
    %v3167 = vld [vmem:[#allocation7 + $0x74] sm:$0xf]
    %v3168 = vld [vmem:[#allocation7 + $0x78] sm:$0xf]
    %v3169 = vld [vmem:[#allocation7 + $0x7c] sm:$0xf]
    %v3170 = vld [vmem:[#allocation7 + $0x80] sm:$0xf]
    %v3171 = vld [vmem:[#allocation7 + $0x84] sm:$0xf]
    %v3172 = vld [vmem:[#allocation7 + $0x88] sm:$0xf]
    %v3173 = vld [vmem:[#allocation7 + $0x8c] sm:$0xf]
    %v3174 = vld [vmem:[#allocation7 + $0x90] sm:$0xf]
    %v3175 = vld [vmem:[#allocation7 + $0x94] sm:$0xf]
    %v3176 = vld [vmem:[#allocation7 + $0x98] sm:$0xf]
    %v3177 = vld [vmem:[#allocation7 + $0x9c] sm:$0xf]
    %v3178 = vld [vmem:[#allocation7 + $0xa0] sm:$0xf]
    %v3179 = vld [vmem:[#allocation7 + $0xa4] sm:$0xf]
    %v3180 = vld [vmem:[#allocation7 + $0xa8] sm:$0xf]
    %v3181 = vld [vmem:[#allocation7 + $0xac] sm:$0xf]
    %v3182 = vld [vmem:[#allocation7 + $0xb0] sm:$0xf]
    %v3183 = vld [vmem:[#allocation7 + $0xb4] sm:$0xf]
    %v3184 = vld [vmem:[#allocation7 + $0xb8] sm:$0xf]
    %v3185 = vld [vmem:[#allocation7 + $0xbc] sm:$0xf]
    %v3186 = vld [vmem:[#allocation7 + $0xc0] sm:$0xf]
    %v3187 = vld [vmem:[#allocation7 + $0xc4] sm:$0xf]
    %v3188 = vld [vmem:[#allocation7 + $0xc8] sm:$0xf]
    %v3189 = vld [vmem:[#allocation7 + $0xcc] sm:$0xf]
    %v3190 = vld [vmem:[#allocation7 + $0xd0] sm:$0xf]
    %v3191 = vld [vmem:[#allocation7 + $0xd4] sm:$0xf]
    %v3192 = vld [vmem:[#allocation7 + $0xd8] sm:$0xf]
    %v3193 = vld [vmem:[#allocation7 + $0xdc] sm:$0xf]
    %v3194 = vld [vmem:[#allocation7 + $0xe0] sm:$0xf]
    %v3195 = vld [vmem:[#allocation7 + $0xe4] sm:$0xf]
    %v3196 = vld [vmem:[#allocation7 + $0xe8] sm:$0xf]
    %v3197 = vld [vmem:[#allocation7 + $0xec] sm:$0xf]
    %v3198 = vld [vmem:[#allocation7 + $0xf0] sm:$0xf]
    %v3199 = vld [vmem:[#allocation7 + $0xf4] sm:$0xf]
    %v3200 = vld [vmem:[#allocation7 + $0xf8] sm:$0xf]
    %v3201 = vld [vmem:[#allocation7 + $0xfc] sm:$0xf]
    %v3202 = vld [vmem:[#allocation8] sm:$0x1]
    %v3204 = vlaneseq
    %v3205 = vshrl.u32 %v3204, 7
    %v3206 = vsub.s32 0, %v3205
    %v3207 = vrot.slane %v3202, %v3206
    %v3273 = vunpack.c.l.b16 %v3138
    %v3274 = vunpack.c.l.b16 %v3139
    %v3275 = vunpack.c.l.b16 %v3140
    %v3276 = vunpack.c.l.b16 %v3141
    %v3277 = vunpack.c.l.b16 %v3142
    %v3278 = vunpack.c.l.b16 %v3143
    %v3279 = vunpack.c.l.b16 %v3144
    %v3280 = vunpack.c.l.b16 %v3145
    %v3281 = vunpack.c.l.b16 %v3146
    %v3282 = vunpack.c.l.b16 %v3147
    %v3283 = vunpack.c.l.b16 %v3148
    %v3284 = vunpack.c.l.b16 %v3149
    %v3285 = vunpack.c.l.b16 %v3150
    %v3286 = vunpack.c.l.b16 %v3151
    %v3287 = vunpack.c.l.b16 %v3152
    %v3288 = vunpack.c.l.b16 %v3153
    %v3289 = vunpack.c.l.b16 %v3154
    %v3290 = vunpack.c.l.b16 %v3155
    %v3291 = vunpack.c.l.b16 %v3156
    %v3292 = vunpack.c.l.b16 %v3157
    %v3293 = vunpack.c.l.b16 %v3158
    %v3294 = vunpack.c.l.b16 %v3159
    %v3295 = vunpack.c.l.b16 %v3160
    %v3296 = vunpack.c.l.b16 %v3161
    %v3297 = vunpack.c.l.b16 %v3162
    %v3298 = vunpack.c.l.b16 %v3163
    %v3299 = vunpack.c.l.b16 %v3164
    %v3300 = vunpack.c.l.b16 %v3165
    %v3301 = vunpack.c.l.b16 %v3166
    %v3302 = vunpack.c.l.b16 %v3167
    %v3303 = vunpack.c.l.b16 %v3168
    %v3304 = vunpack.c.l.b16 %v3169
    %v3305 = vunpack.c.l.b16 %v3170
    %v3306 = vunpack.c.l.b16 %v3171
    %v3307 = vunpack.c.l.b16 %v3172
    %v3308 = vunpack.c.l.b16 %v3173
    %v3309 = vunpack.c.l.b16 %v3174
    %v3310 = vunpack.c.l.b16 %v3175
    %v3311 = vunpack.c.l.b16 %v3176
    %v3312 = vunpack.c.l.b16 %v3177
    %v3313 = vunpack.c.l.b16 %v3178
    %v3314 = vunpack.c.l.b16 %v3179
    %v3315 = vunpack.c.l.b16 %v3180
    %v3316 = vunpack.c.l.b16 %v3181
    %v3317 = vunpack.c.l.b16 %v3182
    %v3318 = vunpack.c.l.b16 %v3183
    %v3319 = vunpack.c.l.b16 %v3184
    %v3320 = vunpack.c.l.b16 %v3185
    %v3321 = vunpack.c.l.b16 %v3186
    %v3322 = vunpack.c.l.b16 %v3187
    %v3323 = vunpack.c.l.b16 %v3188
    %v3324 = vunpack.c.l.b16 %v3189
    %v3325 = vunpack.c.l.b16 %v3190
    %v3326 = vunpack.c.l.b16 %v3191
    %v3327 = vunpack.c.l.b16 %v3192
    %v3328 = vunpack.c.l.b16 %v3193
    %v3329 = vunpack.c.l.b16 %v3194
    %v3330 = vunpack.c.l.b16 %v3195
    %v3331 = vunpack.c.l.b16 %v3196
    %v3332 = vunpack.c.l.b16 %v3197
    %v3333 = vunpack.c.l.b16 %v3198
    %v3334 = vunpack.c.l.b16 %v3199
    %v3335 = vunpack.c.l.b16 %v3200
    %v3336 = vunpack.c.l.b16 %v3201
    %v3337 = vpack.c.b16 %v3274, %v3273
    %v3338 = vpack.c.b16 %v3276, %v3275
    %v3339 = vpack.c.b16 %v3278, %v3277
    %v3340 = vpack.c.b16 %v3280, %v3279
    %v3341 = vpack.c.b16 %v3282, %v3281
    %v3342 = vpack.c.b16 %v3284, %v3283
    %v3343 = vpack.c.b16 %v3286, %v3285
    %v3344 = vpack.c.b16 %v3288, %v3287
    %v3345 = vpack.c.b16 %v3290, %v3289
    %v3346 = vpack.c.b16 %v3292, %v3291
    %v3347 = vpack.c.b16 %v3294, %v3293
    %v3348 = vpack.c.b16 %v3296, %v3295
    %v3349 = vpack.c.b16 %v3298, %v3297
    %v3350 = vpack.c.b16 %v3300, %v3299
    %v3351 = vpack.c.b16 %v3302, %v3301
    %v3352 = vpack.c.b16 %v3304, %v3303
    %v3353 = vpack.c.b16 %v3306, %v3305
    %v3354 = vpack.c.b16 %v3308, %v3307
    %v3355 = vpack.c.b16 %v3310, %v3309
    %v3356 = vpack.c.b16 %v3312, %v3311
    %v3357 = vpack.c.b16 %v3314, %v3313
    %v3358 = vpack.c.b16 %v3316, %v3315
    %v3359 = vpack.c.b16 %v3318, %v3317
    %v3360 = vpack.c.b16 %v3320, %v3319
    %v3361 = vpack.c.b16 %v3322, %v3321
    %v3362 = vpack.c.b16 %v3324, %v3323
    %v3363 = vpack.c.b16 %v3326, %v3325
    %v3364 = vpack.c.b16 %v3328, %v3327
    %v3365 = vpack.c.b16 %v3330, %v3329
    %v3366 = vpack.c.b16 %v3332, %v3331
    %v3367 = vpack.c.b16 %v3334, %v3333
    %v3368 = vpack.c.b16 %v3336, %v3335
    %3401 = vmatprep.subr.bf16.mxu0 0
    %3402 = vmatpush1.bf16.msra.mxu0 %v3337
    %3403 = vmatprep.subr.bf16.mxu0 0
    %3404 = vmatpush1.bf16.msra.mxu0 %v3338
    %3405 = vmatprep.subr.bf16.mxu0 0
    %3406 = vmatpush1.bf16.msra.mxu0 %v3339
    %3407 = vmatprep.subr.bf16.mxu0 0
    %3408 = vmatpush1.bf16.msra.mxu0 %v3340
    %3409 = vmatprep.subr.bf16.mxu0 0
    %3410 = vmatpush1.bf16.msra.mxu0 %v3341
    %3411 = vmatprep.subr.bf16.mxu0 0
    %3412 = vmatpush1.bf16.msra.mxu0 %v3342
    %3413 = vmatprep.subr.bf16.mxu0 0
    %3414 = vmatpush1.bf16.msra.mxu0 %v3343
    %3415 = vmatprep.subr.bf16.mxu0 0
    %3416 = vmatpush1.bf16.msra.mxu0 %v3344
    %3417 = vmatprep.subr.bf16.mxu0 0
    %3418 = vmatpush1.bf16.msra.mxu0 %v3345
    %3419 = vmatprep.subr.bf16.mxu0 0
    %3420 = vmatpush1.bf16.msra.mxu0 %v3346
    %3421 = vmatprep.subr.bf16.mxu0 0
    %3422 = vmatpush1.bf16.msra.mxu0 %v3347
    %3423 = vmatprep.subr.bf16.mxu0 0
    %3424 = vmatpush1.bf16.msra.mxu0 %v3348
    %3425 = vmatprep.subr.bf16.mxu0 0
    %3426 = vmatpush1.bf16.msra.mxu0 %v3349
    %3427 = vmatprep.subr.bf16.mxu0 0
    %3428 = vmatpush1.bf16.msra.mxu0 %v3350
    %3429 = vmatprep.subr.bf16.mxu0 0
    %3430 = vmatpush1.bf16.msra.mxu0 %v3351
    %3431 = vmatprep.subr.bf16.mxu0 0
    %3432 = vmatpush1.bf16.msra.mxu0 %v3352
    %3433 = vmatprep.mubr.bf16.mxu0 %v3135
    %3434 = vmatmul.mubr.bf16.gmra.mrb[0].mxu0 %v3134
    %v3435 = vpop.f32.mrb[0].mxu0
    %v3436 = vadd.f32 %v3207, %v3435
    %v3437 = vpop.f32.mrb[0].mxu0
    %v3438 = vpop.f32.mrb[0].mxu0
    %v3439 = vpop.f32.mrb[0].mxu0
    %3440 = vdwg.mxu0
    %3441 = vmatprep.subr.bf16.mxu0 0
    %3442 = vmatpush1.bf16.msra.mxu0 %v3353
    %3443 = vmatprep.subr.bf16.mxu0 0
    %3444 = vmatpush1.bf16.msra.mxu0 %v3354
    %3445 = vmatprep.subr.bf16.mxu0 0
    %3446 = vmatpush1.bf16.msra.mxu0 %v3355
    %3447 = vmatprep.subr.bf16.mxu0 0
    %3448 = vmatpush1.bf16.msra.mxu0 %v3356
    %3449 = vmatprep.subr.bf16.mxu0 0
    %3450 = vmatpush1.bf16.msra.mxu0 %v3357
    %3451 = vmatprep.subr.bf16.mxu0 0
    %3452 = vmatpush1.bf16.msra.mxu0 %v3358
    %3453 = vmatprep.subr.bf16.mxu0 0
    %3454 = vmatpush1.bf16.msra.mxu0 %v3359
    %3455 = vmatprep.subr.bf16.mxu0 0
    %3456 = vmatpush1.bf16.msra.mxu0 %v3360
    %3457 = vmatprep.subr.bf16.mxu0 0
    %3458 = vmatpush1.bf16.msra.mxu0 %v3361
    %3459 = vmatprep.subr.bf16.mxu0 0
    %3460 = vmatpush1.bf16.msra.mxu0 %v3362
    %3461 = vmatprep.subr.bf16.mxu0 0
    %3462 = vmatpush1.bf16.msra.mxu0 %v3363
    %3463 = vmatprep.subr.bf16.mxu0 0
    %3464 = vmatpush1.bf16.msra.mxu0 %v3364
    %3465 = vmatprep.subr.bf16.mxu0 0
    %3466 = vmatpush1.bf16.msra.mxu0 %v3365
    %3467 = vmatprep.subr.bf16.mxu0 0
    %3468 = vmatpush1.bf16.msra.mxu0 %v3366
    %3469 = vmatprep.subr.bf16.mxu0 0
    %3470 = vmatpush1.bf16.msra.mxu0 %v3367
    %3471 = vmatprep.subr.bf16.mxu0 0
    %3472 = vmatpush1.bf16.msra.mxu0 %v3368
    %3473 = vmatprep.mubr.bf16.mxu0 %v3137
    %3474 = vmatmul.mubr.bf16.gmra.mrb[0].mxu0 %v3136
    %v3475 = vpop.f32.mrb[0].mxu0
    %v3476 = vadd.f32 %v3436, %v3475
    %v3477 = vpop.f32.mrb[0].mxu0
    %v3478 = vpop.f32.mrb[0].mxu0
    %v3479 = vpop.f32.mrb[0].mxu0
    %3480 = vdwg.mxu0
    %v3481 = vmax.f32 %v3476, 0.0
    %v3482 = vpack.c.bf16 %v3481, %v3481
    %v3483 = vld [vmem:[#allocation10] sm:$0xf]
    %v3484 = vld [vmem:[#allocation10 + $0x4] sm:$0xf]
    %v3485 = vld [vmem:[#allocation10 + $0x8] sm:$0xf]
    %v3486 = vld [vmem:[#allocation10 + $0xc] sm:$0xf]
    %v3487 = vld [vmem:[#allocation10 + $0x10] sm:$0xf]
    %v3488 = vld [vmem:[#allocation10 + $0x14] sm:$0xf]
    %v3489 = vld [vmem:[#allocation10 + $0x18] sm:$0xf]
    %v3490 = vld [vmem:[#allocation10 + $0x1c] sm:$0xf]
    %v3491 = vld [vmem:[#allocation10 + $0x20] sm:$0xf]
    %v3492 = vld [vmem:[#allocation10 + $0x24] sm:$0xf]
    %v3493 = vld [vmem:[#allocation10 + $0x28] sm:$0xf]
    %v3494 = vld [vmem:[#allocation10 + $0x2c] sm:$0xf]
    %v3495 = vld [vmem:[#allocation10 + $0x30] sm:$0xf]
    %v3496 = vld [vmem:[#allocation10 + $0x34] sm:$0xf]
    %v3497 = vld [vmem:[#allocation10 + $0x38] sm:$0xf]
    %v3498 = vld [vmem:[#allocation10 + $0x3c] sm:$0xf]
    %v3499 = vld [vmem:[#allocation11] sm:$0x1]
    %v3501 = vlaneseq
    %v3502 = vshrl.u32 %v3501, 7
    %v3503 = vsub.s32 0, %v3502
    %v3504 = vrot.slane %v3499, %v3503
    %v3522 = vunpack.c.l.b16 %v3483
    %v3523 = vunpack.c.l.b16 %v3484
    %v3524 = vunpack.c.l.b16 %v3485
    %v3525 = vunpack.c.l.b16 %v3486
    %v3526 = vunpack.c.l.b16 %v3487
    %v3527 = vunpack.c.l.b16 %v3488
    %v3528 = vunpack.c.l.b16 %v3489
    %v3529 = vunpack.c.l.b16 %v3490
    %v3530 = vunpack.c.l.b16 %v3491
    %v3531 = vunpack.c.l.b16 %v3492
    %v3532 = vunpack.c.l.b16 %v3493
    %v3533 = vunpack.c.l.b16 %v3494
    %v3534 = vunpack.c.l.b16 %v3495
    %v3535 = vunpack.c.l.b16 %v3496
    %v3536 = vunpack.c.l.b16 %v3497
    %v3537 = vunpack.c.l.b16 %v3498
    %v3538 = vpack.c.b16 %v3523, %v3522
    %v3539 = vpack.c.b16 %v3525, %v3524
    %v3540 = vpack.c.b16 %v3527, %v3526
    %v3541 = vpack.c.b16 %v3529, %v3528
    %v3542 = vpack.c.b16 %v3531, %v3530
    %v3543 = vpack.c.b16 %v3533, %v3532
    %v3544 = vpack.c.b16 %v3535, %v3534
    %v3545 = vpack.c.b16 %v3537, %v3536
    %3554 = vmatprep.subr.bf16.mxu0 0
    %3555 = vmatpush1.bf16.msra.mxu0 %v3538
    %3556 = vmatprep.subr.bf16.mxu0 0
    %3557 = vmatpush1.bf16.msra.mxu0 %v3539
    %3558 = vmatprep.subr.bf16.mxu0 0
    %3559 = vmatpush1.bf16.msra.mxu0 %v3540
    %3560 = vmatprep.subr.bf16.mxu0 0
    %3561 = vmatpush1.bf16.msra.mxu0 %v3541
    %3562 = vmatprep.subr.bf16.mxu0 0
    %3563 = vmatpush1.bf16.msra.mxu0 %v3542
    %3564 = vmatprep.subr.bf16.mxu0 0
    %3565 = vmatpush1.bf16.msra.mxu0 %v3543
    %3566 = vmatprep.subr.bf16.mxu0 0
    %3567 = vmatpush1.bf16.msra.mxu0 %v3544
    %3568 = vmatprep.subr.bf16.mxu0 0
    %3569 = vmatpush1.bf16.msra.mxu0 %v3545
    %3570 = vmatprep.subr.bf16.mxu0 0
    %3571 = vmatpush1.bf16.msra.mxu0 0
    %3572 = vmatprep.subr.bf16.mxu0 0
    %3573 = vmatpush1.bf16.msra.mxu0 0
    %3574 = vmatprep.subr.bf16.mxu0 0
    %3575 = vmatpush1.bf16.msra.mxu0 0
    %3576 = vmatprep.subr.bf16.mxu0 0
    %3577 = vmatpush1.bf16.msra.mxu0 0
    %3578 = vmatprep.subr.bf16.mxu0 0
    %3579 = vmatpush1.bf16.msra.mxu0 0
    %3580 = vmatprep.subr.bf16.mxu0 0
    %3581 = vmatpush1.bf16.msra.mxu0 0
    %3582 = vmatprep.subr.bf16.mxu0 0
    %3583 = vmatpush1.bf16.msra.mxu0 0
    %3584 = vmatprep.subr.bf16.mxu0 0
    %3585 = vmatpush1.bf16.msra.mxu0 0
    %3586 = vmatprep.mubr.bf16.mxu0 0
    %3587 = vmatmul.mubr.bf16.gmra.mrb[0].mxu0 %v3482
    %v3588 = vpop.f32.mrb[0].mxu0
    %v3589 = vadd.f32 %v3504, %v3588
    %v3590 = vpop.f32.mrb[0].mxu0
    %v3591 = vpop.f32.mrb[0].mxu0
    %v3592 = vpop.f32.mrb[0].mxu0
    %3593 = vdwg.mxu0
    %3594 = vst [vmem:[#allocation13] sm:$0xff] %v3589
    // Predicated region
    $region54: #{_forward.1} parent=1 // pred_check
      _
    $region55: #{_forward.1} parent=1 // pred_check_branch
      %3596 = sbr.rel (0) target = $region57
    $region56: #{_forward.1} parent=1 // pred_region
      %s3598 = ssub.s32 128, 128
      %3599 = vsyncadd [#allocation4], %s3598
      %s3601 = sshll.u32 [#allocation13], 4
      %s3602 = int_to_ptr.vmem [resolvable:$true] %s3601
      %3604 = dma.vmem_to_hbm [thread:$0]  %s3602, 128, %s7, [#allocation4]
    $region57: #{_forward.1} parent=1 // pred_fallthru
      _
    // Predicated region
    $region58: #{_forward.1} parent=1 // pred_check
      _
    $region59: #{_forward.1} parent=1 // pred_check_branch
      %3606 = sbr.rel (0) target = $region61
    $region60: #{_forward.1} parent=1 // pred_region
      %3607 = dma.done [#allocation4], 128
    $region61: #{_forward.1} parent=1 // pred_fallthru
      _
    %3608 = vsyncpa [#allocation3], 1
    %3609 = vsyncpa [#allocation6], 1
    %3610 = vsyncpa [#allocation9], 1
    %3611 = vsyncpa [#allocation12], 1
    %3612 = vsyncpa [#allocation4], 1

</llo_original>
